<compile_context>
chip_gen: v5e
topology: v5e:2x2
jax: 0.10.0
libtpu: 0.0.40
codegen_flags: <defaults>
</compile_context>

<pallas_src>
import functools

import jax
import jax.numpy as jnp
from jax import lax
from jax.experimental import pallas as pl
from jax.experimental.pallas import tpu as pltpu


# ----------------------------------------------------------------------------
# Generation-aware VMEM sizing.
# ----------------------------------------------------------------------------
def _vmem_capacity_bytes():
    try:
        cap = getattr(pltpu.get_tpu_info(), "vmem_capacity_bytes", None)
        if cap:
            return int(cap)
    except Exception:
        pass
    return 64 * 1024 * 1024          # conservative (v7x per-core VMEM)


_VMEM_CAP = _vmem_capacity_bytes()
_VMEM_LIMIT = int(_VMEM_CAP * 3 // 4)   # scoped limit handed to Mosaic
_VMEM_BUDGET = int(_VMEM_CAP * 2 // 5)  # target for our own (double-buffered) blocks


def _round_up(n, m):
    return ((n + m - 1) // m) * m


def _pick_divisor(n, candidates):
    for c in candidates:
        if c <= n and n % c == 0:
            return c
    return n


def _pick_batch_tile(B, Hp, budget_bytes):
    # Resident per grid step (bytes):
    #   xp fwd/bwd blocks  : 2 dirs * 2 bufs * Bt*4Hp * 2B (bf16)  = 32*Bt*Hp
    #   out fwd/bwd blocks : 2 dirs * 2 bufs * Bt*Hp  * 4B (f32)   = 16*Bt*Hp
    #   h/c scratch        : 4 * Bt*Hp * 4B                         = 16*Bt*Hp
    #   gate intermediates : ~2 dirs * Bt*4Hp * 4B                  = 32*Bt*Hp
    #   recurrent weights  : 2 dirs * Hp*4Hp * 2B (bf16, resident)  = 16*Hp*Hp
    per_row = 96 * Hp
    fixed = 16 * Hp * Hp + (1 << 20)     # weights + slack for lens / bookkeeping
    cap = max(8, (budget_bytes - fixed) // max(per_row, 1))
    bt = None
    for c in (512, 256, 128, 64, 32, 16, 8):
        if c <= cap and B % c == 0:
            bt = c
            break
    if bt is None:
        bt = B                            # small / odd batches: one full block (legal)
    # v7x megacore: keep at least 2 batch programs when the batch allows it.
    if B // bt < 2 and B % 2 == 0 and (B // 2) % 8 == 0:
        bt = B // 2
    return bt


# ----------------------------------------------------------------------------
# 1) Hoisted input projection: one tiled GEMM over all (time, batch) rows.
#    bf16 operands, f32 accumulation, bf16 output (xp).
# ----------------------------------------------------------------------------
def _input_proj_kernel(x_ref, w_ref, b_ref, o_ref):
    acc = jnp.dot(x_ref[...].astype(jnp.bfloat16), w_ref[...],
                  preferred_element_type=jnp.float32)
    o_ref[...] = (acc + b_ref[...]).astype(o_ref.dtype)


def _input_projection(x2d, w_bf16, b_f32, budget_bytes):
    M, D = x2d.shape
    N = w_bf16.shape[1]
    tn = _pick_divisor(N, (2048, 1024, 512, 256, 128))
    tm = None
    for c in (1024, 512, 256, 128, 64, 32, 16, 8):
        if c > M or M % c != 0:
            continue
        blk = 2 * (c * D * 4 + D * tn * 2 + tn * 4 + c * tn * 2)
        if blk <= budget_bytes:
            tm = c
            break
    if tm is None:
        tm = _pick_divisor(M, (64, 32, 16, 8))
    return pl.pallas_call(
        _input_proj_kernel,
        grid=(M // tm, N // tn),
        in_specs=[
            pl.BlockSpec((tm, D), lambda i, j: (i, 0)),
            pl.BlockSpec((D, tn), lambda i, j: (0, j)),
            pl.BlockSpec((1, tn), lambda i, j: (0, j)),
        ],
        out_specs=pl.BlockSpec((tm, tn), lambda i, j: (i, j)),
        out_shape=jax.ShapeDtypeStruct((M, N), jnp.bfloat16),
        compiler_params=pltpu.CompilerParams(
            dimension_semantics=("parallel", "parallel"),
            vmem_limit_bytes=_VMEM_LIMIT),
    )(x2d, w_bf16, b_f32)


# ----------------------------------------------------------------------------
# 2) Streaming recurrent kernel: grid = (batch tiles, time).  Each grid step
#    processes forward time t=k and backward time t=L-1-k for one batch tile.
#    xf_ref : (1, Bt, 4Hp) bf16  forward pre-projection at time k
#    xb_ref : (1, Bt, 4Hp) bf16  backward pre-projection at time L-1-k
#    len_ref: (Bt, 1) int32 true sequence lengths
#    whf/whb: (Hp, 4Hp) bf16 recurrent weights (per direction, no zero blocks)
#    of/ob  : (1, Bt, Hp) f32 time-major outputs (fwd written at k, bwd at L-1-k)
#    h/c scratch: persistent f32 carries, re-initialized at k == 0.
# ----------------------------------------------------------------------------
def _bilstm_step_kernel(Hp, L, xf_ref, xb_ref, len_ref, whf_ref, whb_ref,
                        of_ref, ob_ref, hf_sc, cf_sc, hb_sc, cb_sc):
    k = pl.program_id(1)

    @pl.when(k == 0)
    def _():
        hf_sc[...] = jnp.zeros_like(hf_sc)
        cf_sc[...] = jnp.zeros_like(cf_sc)
        hb_sc[...] = jnp.zeros_like(hb_sc)
        cb_sc[...] = jnp.zeros_like(cb_sc)

    lens = len_ref[...]                    # (Bt, 1) int32
    tf = k
    tb = L - 1 - k

    def cell(x_pre, h_prev, c_prev, w_ref):
        rec = jnp.dot(h_prev.astype(jnp.bfloat16), w_ref[...],
                      preferred_element_type=jnp.float32)      # (Bt, 4Hp)
        g = rec + x_pre.astype(jnp.float32)
        i = jax.nn.sigmoid(g[:, 0:Hp])
        f = jax.nn.sigmoid(g[:, Hp:2 * Hp])
        gg = jnp.tanh(g[:, 2 * Hp:3 * Hp])
        o = jax.nn.sigmoid(g[:, 3 * Hp:4 * Hp])
        c_new = f * c_prev + i * gg
        h_new = o * jnp.tanh(c_new)
        return h_new, c_new

    hf, cf = cell(xf_ref[0], hf_sc[...], cf_sc[...], whf_ref)
    hb, cb = cell(xb_ref[0], hb_sc[...], cb_sc[...], whb_ref)

    vf = tf < lens                         # (Bt, 1) packed-sequence masks
    vb = tb < lens

    # Lane-dense (Bt, Hp) stores; padded positions emit exactly 0.
    of_ref[0] = jnp.where(vf, hf, 0.0)
    ob_ref[0] = jnp.where(vb, hb, 0.0)

    # Padded steps do not advance the carries (backward direction therefore
    # effectively starts at t = len-1 with zero state).
    hf_sc[...] = jnp.where(vf, hf, hf_sc[...])
    cf_sc[...] = jnp.where(vf, cf, cf_sc[...])
    hb_sc[...] = jnp.where(vb, hb, hb_sc[...])
    cb_sc[...] = jnp.where(vb, cb, cb_sc[...])


# ----------------------------------------------------------------------------
# Weight padding: zero-pad each [i|f|g|o] gate block from Hh to Hp lanes.
# Padded hidden units stay exactly 0 through the recurrence (zero input
# columns, zero bias, zero recurrent rows/columns), so slicing the first Hh
# lanes of each direction at the end reproduces the unpadded result exactly.
# ----------------------------------------------------------------------------
def _pad_gate_cols(w, Hh, Hp):
    lead = w.shape[:-1]
    w4 = w.reshape(lead + (4, Hh))
    pad = [(0, 0)] * (len(lead) + 1) + [(0, Hp - Hh)]
    return jnp.pad(w4, pad).reshape(lead + (4 * Hp,))


def bilstm(x, lengths, lstm_params):
    """Masked BiLSTM, pack_padded/pad_packed semantics.

    x: (B, L, D); lengths: (B,); lstm_params = (W_ih_f, W_hh_f, b_f,
    W_ih_b, W_hh_b, b_b), pre-transposed.  Returns (B, L, 2*Hh) float32.
    """
    B, L, D = x.shape
    wfi, wfh, bf, wbi, wbh, bb = lstm_params
    Hh = wfh.shape[0]
    Hp = _round_up(max(Hh, 1), 128)          # lane-aligned hidden width

    wfi_p = _pad_gate_cols(wfi.astype(jnp.float32), Hh, Hp)               # (D, 4Hp)
    wbi_p = _pad_gate_cols(wbi.astype(jnp.float32), Hh, Hp)
    bf_p = _pad_gate_cols(bf.astype(jnp.float32), Hh, Hp)                 # (1, 4Hp)
    bb_p = _pad_gate_cols(bb.astype(jnp.float32), Hh, Hp)
    wfh_p = jnp.pad(_pad_gate_cols(wfh.astype(jnp.float32), Hh, Hp),
                    ((0, Hp - Hh), (0, 0)))                               # (Hp, 4Hp)
    wbh_p = jnp.pad(_pad_gate_cols(wbh.astype(jnp.float32), Hh, Hp),
                    ((0, Hp - Hh), (0, 0)))

    wih_cat = jnp.concatenate([wfi_p, wbi_p], axis=1).astype(jnp.bfloat16)  # (D, 8Hp)
    b_cat = jnp.concatenate([bf_p, bb_p], axis=1)                           # (1, 8Hp)
    whh_f = wfh_p.astype(jnp.bfloat16)
    whh_b = wbh_p.astype(jnp.bfloat16)

    # Hoisted input projection over all L*B rows, time-major so the recurrent
    # kernel streams dense (Bt, 4Hp) slabs per step.
    # TODO(synk): on v5e (HBM-bound) fuse this projection into the recurrent
    # kernel to avoid materializing xp in HBM when 8*Hp >> D.
    x_tm = jnp.transpose(x, (1, 0, 2)).reshape(L * B, D).astype(jnp.float32)
    xp = _input_projection(x_tm, wih_cat, b_cat, _VMEM_BUDGET)
    xp = xp.reshape(L, B, 8 * Hp)

    lens2d = lengths.astype(jnp.int32).reshape(B, 1)

    Bt = _pick_batch_tile(B, Hp, _VMEM_BUDGET)
    kernel = functools.partial(_bilstm_step_kernel, Hp, L)
    out_f, out_b = pl.pallas_call(
        kernel,
        grid=(B // Bt, L),
        in_specs=[
            pl.BlockSpec((1, Bt, 4 * Hp), lambda b, k: (k, b, 0)),          # fwd xp
            pl.BlockSpec((1, Bt, 4 * Hp), lambda b, k: (L - 1 - k, b, 1)),  # bwd xp
            pl.BlockSpec((Bt, 1), lambda b, k: (b, 0)),
            pl.BlockSpec((Hp, 4 * Hp), lambda b, k: (0, 0)),
            pl.BlockSpec((Hp, 4 * Hp), lambda b, k: (0, 0)),
        ],
        out_specs=[
            pl.BlockSpec((1, Bt, Hp), lambda b, k: (k, b, 0)),
            pl.BlockSpec((1, Bt, Hp), lambda b, k: (L - 1 - k, b, 0)),
        ],
        out_shape=[
            jax.ShapeDtypeStruct((L, B, Hp), jnp.float32),
            jax.ShapeDtypeStruct((L, B, Hp), jnp.float32),
        ],
        scratch_shapes=[pltpu.VMEM((Bt, Hp), jnp.float32)] * 4,
        compiler_params=pltpu.CompilerParams(
            dimension_semantics=("parallel", "arbitrary"),
            vmem_limit_bytes=_VMEM_LIMIT),
    )(xp, xp, lens2d, whh_f, whh_b)

    # Layout glue back to the PyTorch batch-first (B, L, 2*Hh) contract.
    # TODO(synk): skip this transpose when the consumer accepts time-major output.
    out = jnp.concatenate([out_f[..., :Hh], out_b[..., :Hh]], axis=-1)
    return jnp.transpose(out, (1, 0, 2))


# ----------------------------------------------------------------------------
# Pure-JAX f32 reference (same packed-sequence masking), correctness gate.
# ----------------------------------------------------------------------------
def _bilstm_reference(x, lengths, lstm_params):
    wfi, wfh, bf, wbi, wbh, bb = lstm_params
    B, L, D = x.shape
    Hh = wfh.shape[0]

    def run(w_ih, w_hh, b, reverse):
        def cell(carry, t):
            h, c = carry
            xt = lax.dynamic_index_in_dim(x, t, axis=1, keepdims=False)
            g = xt @ w_ih + h @ w_hh + b
            i = jax.nn.sigmoid(g[:, 0:Hh])
            f = jax.nn.sigmoid(g[:, Hh:2 * Hh])
            gg = jnp.tanh(g[:, 2 * Hh:3 * Hh])
            o = jax.nn.sigmoid(g[:, 3 * Hh:4 * Hh])
            c_new = f * c + i * gg
            h_new = o * jnp.tanh(c_new)
            valid = (t < lengths)[:, None]
            h = jnp.where(valid, h_new, h)
            c = jnp.where(valid, c_new, c)
            return (h, c), jnp.where(valid, h, 0.0)

        ts = jnp.arange(L)[::-1] if reverse else jnp.arange(L)
        init = (jnp.zeros((B, Hh), jnp.float32), jnp.zeros((B, Hh), jnp.float32))
        _, outs = lax.scan(cell, init, ts)
        if reverse:
            outs = outs[::-1]
        return jnp.transpose(outs, (1, 0, 2))

    return jnp.concatenate(
        [run(wfi, wfh, bf, False), run(wbi, wbh, bb, True)], axis=-1)


if __name__ == "__main__":
    B, L, D, H = 2, 8, 24, 32     # hidden_size=32 -> output features = 64

    key = jax.random.PRNGKey(0)
    ks = jax.random.split(key, 8)
    u = lambda k, shape, s=0.1: jax.random.uniform(k, shape, jnp.float32, -s, s)
    params = (
        u(ks[0], (D, 4 * H)),     # W_ih fwd (transposed), gates [i,f,g,o]
        u(ks[1], (H, 4 * H)),     # W_hh fwd (transposed)
        u(ks[2], (1, 4 * H)),     # b_ih + b_hh fwd
        u(ks[3], (D, 4 * H)),     # W_ih bwd
        u(ks[4], (H, 4 * H)),     # W_hh bwd
        u(ks[5], (1, 4 * H)),     # bias bwd
    )
    x = jax.random.normal(ks[6], (B, L, D), dtype=jnp.float32)
    # max(seq_lengths) == padded length, matching pad_packed_sequence shapes.
    seq_lengths = jnp.array([L, 5], dtype=jnp.int32)

    fn = jax.jit(bilstm)
    out = jax.block_until_ready(fn(x, seq_lengths, params))
    ref = jax.block_until_ready(_bilstm_reference(x, seq_lengths, params))

    assert out.shape == (B, L, 2 * H)
    assert bool(jnp.all(jnp.isfinite(out)))
    # Padded positions must be exactly zero (pad_packed_sequence semantics).
    assert bool(jnp.all(out[1, 5:, :] == 0.0))
    # bf16 MXU operands with f32 accumulation -> relaxed tolerance vs f32 ref.
    assert bool(jnp.allclose(out, ref, atol=2e-2, rtol=2e-2)), float(
        jnp.max(jnp.abs(out - ref)))
    print("KERNEL_OK")
</pallas_src>

<mosaic_0001>
module attributes {stable_mosaic.version = 11 : i64} {
  func.func @_input_proj_kernel(%arg0: i32, %arg1: i32, %arg2: memref<16x24xf32, #tpu.memory_space<vmem>>, %arg3: memref<24x1024xbf16, #tpu.memory_space<vmem>>, %arg4: memref<1x1024xf32, #tpu.memory_space<vmem>>, %arg5: memref<16x1024xbf16, #tpu.memory_space<vmem>>) attributes {dimension_semantics = [#tpu.dimension_semantics<parallel>, #tpu.dimension_semantics<parallel>], iteration_bounds = array<i64: 1, 1>, scalar_prefetch = 0 : i64, scratch_operands = 0 : i64, tpu.core_type = #tpu.core_type<tc>, window_params = [{transform_indices = @transform_0, window_bounds = array<i64: 16, 24>}, {transform_indices = @transform_1, window_bounds = array<i64: 24, 1024>}, {transform_indices = @transform_2, window_bounds = array<i64: 1, 1024>}, {transform_indices = @transform_3, window_bounds = array<i64: 16, 1024>}]} {
    %c0 = arith.constant 0 : index
    %c0_0 = arith.constant 0 : index
    %0 = vector.load %arg2[%c0, %c0_0] : memref<16x24xf32, #tpu.memory_space<vmem>>, vector<16x24xf32>
    %1 = arith.truncf %0 : vector<16x24xf32> to vector<16x24xbf16>
    %c0_1 = arith.constant 0 : index
    %c0_2 = arith.constant 0 : index
    %2 = vector.load %arg3[%c0_1, %c0_2] : memref<24x1024xbf16, #tpu.memory_space<vmem>>, vector<24x1024xbf16>
    %cst = arith.constant dense<0.000000e+00> : vector<16x1024xf32>
    %3 = tpu.matmul %1, %2, %cst {dimension_numbers = #tpu.dot_dimension_numbers<[1], [0], [0], [1], [0, 0, 1, 1], [], []>} : vector<16x24xbf16>, vector<24x1024xbf16>, vector<16x1024xf32> -> vector<16x1024xf32>
    %c0_3 = arith.constant 0 : index
    %c0_4 = arith.constant 0 : index
    %4 = vector.load %arg4[%c0_3, %c0_4] : memref<1x1024xf32, #tpu.memory_space<vmem>>, vector<1x1024xf32>
    %5 = vector.broadcast %4 : vector<1x1024xf32> to vector<16x1024xf32>
    %6 = arith.addf %3, %5 : vector<16x1024xf32>
    %7 = arith.truncf %6 : vector<16x1024xf32> to vector<16x1024xbf16>
    %c0_5 = arith.constant 0 : index
    %c0_6 = arith.constant 0 : index
    %8 = vector.load %arg5[%c0_5, %c0_6] : memref<16x1024xbf16, #tpu.memory_space<vmem>>, vector<16x1024xbf16>
    tpu.vector_store %arg5[%c0_5, %c0_6], %7 {strides = array<i32>} : memref<16x1024xbf16, #tpu.memory_space<vmem>>, vector<16x1024xbf16>,
    return
  }
  func.func @transform_0(%arg0: i32, %arg1: i32) -> (i32, i32) {
    %c0_i32 = arith.constant 0 : i32
    %c0_i32_0 = arith.constant 0 : i32
    return %arg0, %c0_i32 : i32, i32
  }
  func.func @transform_1(%arg0: i32, %arg1: i32) -> (i32, i32) {
    %c0_i32 = arith.constant 0 : i32
    %c0_i32_0 = arith.constant 0 : i32
    return %c0_i32, %arg1 : i32, i32
  }
  func.func @transform_2(%arg0: i32, %arg1: i32) -> (i32, i32) {
    %c0_i32 = arith.constant 0 : i32
    %c0_i32_0 = arith.constant 0 : i32
    return %c0_i32, %arg1 : i32, i32
  }
  func.func @transform_3(%arg0: i32, %arg1: i32) -> (i32, i32) {
    %c0_i32 = arith.constant 0 : i32
    return %arg0, %arg1 : i32, i32
  }
}

module attributes {stable_mosaic.version = 11 : i64} {
  func.func @_bilstm_step_kernel(%arg0: i32, %arg1: i32, %arg2: memref<1x2x512xbf16, #tpu.memory_space<vmem>>, %arg3: memref<1x2x512xbf16, #tpu.memory_space<vmem>>, %arg4: memref<2x1xi32, #tpu.memory_space<vmem>>, %arg5: memref<128x512xbf16, #tpu.memory_space<vmem>>, %arg6: memref<128x512xbf16, #tpu.memory_space<vmem>>, %arg7: memref<1x2x128xf32, #tpu.memory_space<vmem>>, %arg8: memref<1x2x128xf32, #tpu.memory_space<vmem>>, %arg9: memref<2x128xf32, #tpu.memory_space<vmem>>, %arg10: memref<2x128xf32, #tpu.memory_space<vmem>>, %arg11: memref<2x128xf32, #tpu.memory_space<vmem>>, %arg12: memref<2x128xf32, #tpu.memory_space<vmem>>) attributes {dimension_semantics = [#tpu.dimension_semantics<parallel>, #tpu.dimension_semantics<arbitrary>], iteration_bounds = array<i64: 1, 8>, scalar_prefetch = 0 : i64, scratch_operands = 4 : i64, tpu.core_type = #tpu.core_type<tc>, window_params = [{transform_indices = @transform_0, window_bounds = array<i64: 1, 2, 512>}, {transform_indices = @transform_1, window_bounds = array<i64: 1, 2, 512>}, {transform_indices = @transform_2, window_bounds = array<i64: 2, 1>}, {pipeline_mode = #tpu.pipeline_mode<synchronous>, transform_indices = @transform_3, window_bounds = array<i64: 128, 512>}, {pipeline_mode = #tpu.pipeline_mode<synchronous>, transform_indices = @transform_4, window_bounds = array<i64: 128, 512>}, {transform_indices = @transform_5, window_bounds = array<i64: 1, 2, 128>}, {transform_indices = @transform_6, window_bounds = array<i64: 1, 2, 128>}]} {
    %c0_i32 = arith.constant 0 : i32
    %0 = arith.cmpi eq, %arg1, %c0_i32 : i32
    %1 = arith.extui %0 : i1 to i32
    %c0_i32_0 = arith.constant 0 : i32
    %2 = arith.cmpi ne, %1, %c0_i32_0 : i32
    scf.if %2 {
      %cst_51 = arith.constant 0.000000e+00 : f32
      %111 = vector.broadcast %cst_51 : f32 to vector<2x128xf32>
      %c0_52 = arith.constant 0 : index
      %c0_53 = arith.constant 0 : index
      %112 = vector.load %arg9[%c0_52, %c0_53] : memref<2x128xf32, #tpu.memory_space<vmem>>, vector<2x128xf32>
      tpu.vector_store %arg9[%c0_52, %c0_53], %111 {strides = array<i32>} : memref<2x128xf32, #tpu.memory_space<vmem>>, vector<2x128xf32>,
      %cst_54 = arith.constant 0.000000e+00 : f32
      %113 = vector.broadcast %cst_54 : f32 to vector<2x128xf32>
      %c0_55 = arith.constant 0 : index
      %c0_56 = arith.constant 0 : index
      %114 = vector.load %arg10[%c0_55, %c0_56] : memref<2x128xf32, #tpu.memory_space<vmem>>, vector<2x128xf32>
      tpu.vector_store %arg10[%c0_55, %c0_56], %113 {strides = array<i32>} : memref<2x128xf32, #tpu.memory_space<vmem>>, vector<2x128xf32>,
      %cst_57 = arith.constant 0.000000e+00 : f32
      %115 = vector.broadcast %cst_57 : f32 to vector<2x128xf32>
      %c0_58 = arith.constant 0 : index
      %c0_59 = arith.constant 0 : index
      %116 = vector.load %arg11[%c0_58, %c0_59] : memref<2x128xf32, #tpu.memory_space<vmem>>, vector<2x128xf32>
      tpu.vector_store %arg11[%c0_58, %c0_59], %115 {strides = array<i32>} : memref<2x128xf32, #tpu.memory_space<vmem>>, vector<2x128xf32>,
      %cst_60 = arith.constant 0.000000e+00 : f32
      %117 = vector.broadcast %cst_60 : f32 to vector<2x128xf32>
      %c0_61 = arith.constant 0 : index
      %c0_62 = arith.constant 0 : index
      %118 = vector.load %arg12[%c0_61, %c0_62] : memref<2x128xf32, #tpu.memory_space<vmem>>, vector<2x128xf32>
      tpu.vector_store %arg12[%c0_61, %c0_62], %117 {strides = array<i32>} : memref<2x128xf32, #tpu.memory_space<vmem>>, vector<2x128xf32>,
    } else {
    }
    %c0 = arith.constant 0 : index
    %c0_1 = arith.constant 0 : index
    %3 = vector.load %arg4[%c0, %c0_1] : memref<2x1xi32, #tpu.memory_space<vmem>>, vector<2x1xi32>
    %c7_i32 = arith.constant 7 : i32
    %4 = arith.subi %c7_i32, %arg1 : i32
    %c0_2 = arith.constant 0 : index
    %c0_3 = arith.constant 0 : index
    %c0_4 = arith.constant 0 : index
    %5 = vector.load %arg2[%c0_2, %c0_3, %c0_4] : memref<1x2x512xbf16, #tpu.memory_space<vmem>>, vector<1x2x512xbf16>
    %6 = vector.shape_cast %5 : vector<1x2x512xbf16> to vector<2x512xbf16>
    %c0_5 = arith.constant 0 : index
    %c0_6 = arith.constant 0 : index
    %7 = vector.load %arg9[%c0_5, %c0_6] : memref<2x128xf32, #tpu.memory_space<vmem>>, vector<2x128xf32>
    %c0_7 = arith.constant 0 : index
    %c0_8 = arith.constant 0 : index
    %8 = vector.load %arg10[%c0_7, %c0_8] : memref<2x128xf32, #tpu.memory_space<vmem>>, vector<2x128xf32>
    %9 = arith.truncf %7 : vector<2x128xf32> to vector<2x128xbf16>
    %c0_9 = arith.constant 0 : index
    %c0_10 = arith.constant 0 : index
    %10 = vector.load %arg5[%c0_9, %c0_10] : memref<128x512xbf16, #tpu.memory_space<vmem>>, vector<128x512xbf16>
    %cst = arith.constant dense<0.000000e+00> : vector<2x512xf32>
    %11 = tpu.matmul %9, %10, %cst {dimension_numbers = #tpu.dot_dimension_numbers<[1], [0], [0], [1], [0, 0, 1, 1], [], []>} : vector<2x128xbf16>, vector<128x512xbf16>, vector<2x512xf32> -> vector<2x512xf32>
    %12 = arith.extf %6 : vector<2x512xbf16> to vector<2x512xf32>
    %13 = arith.addf %11, %12 : vector<2x512xf32>
    %14 = vector.extract_strided_slice %13 {offsets = [0, 0], sizes = [2, 128], strides = [1, 1]} : vector<2x512xf32> to vector<2x128xf32>
    %15 = arith.negf %14 : vector<2x128xf32>
    %16 = math.exp %15 : vector<2x128xf32>
    %cst_11 = arith.constant 1.000000e+00 : f32
    %17 = vector.broadcast %cst_11 : f32 to vector<2x128xf32>
    %18 = arith.addf %17, %16 : vector<2x128xf32>
    %19 = arith.divf %17, %18 : vector<2x128xf32>
    %20 = vector.extract_strided_slice %13 {offsets = [0, 128], sizes = [2, 128], strides = [1, 1]} : vector<2x512xf32> to vector<2x128xf32>
    %21 = arith.negf %20 : vector<2x128xf32>
    %22 = math.exp %21 : vector<2x128xf32>
    %cst_12 = arith.constant 1.000000e+00 : f32
    %23 = vector.broadcast %cst_12 : f32 to vector<2x128xf32>
    %24 = arith.addf %23, %22 : vector<2x128xf32>
    %25 = arith.divf %23, %24 : vector<2x128xf32>
    %26 = vector.extract_strided_slice %13 {offsets = [0, 256], sizes = [2, 128], strides = [1, 1]} : vector<2x512xf32> to vector<2x128xf32>
    %27 = math.tanh %26 : vector<2x128xf32>
    %28 = vector.extract_strided_slice %13 {offsets = [0, 384], sizes = [2, 128], strides = [1, 1]} : vector<2x512xf32> to vector<2x128xf32>
    %29 = arith.negf %28 : vector<2x128xf32>
    %30 = math.exp %29 : vector<2x128xf32>
    %cst_13 = arith.constant 1.000000e+00 : f32
    %31 = vector.broadcast %cst_13 : f32 to vector<2x128xf32>
    %32 = arith.addf %31, %30 : vector<2x128xf32>
    %33 = arith.divf %31, %32 : vector<2x128xf32>
    %34 = arith.mulf %25, %8 : vector<2x128xf32>
    %35 = arith.mulf %19, %27 : vector<2x128xf32>
    %36 = arith.addf %34, %35 : vector<2x128xf32>
    %37 = math.tanh %36 : vector<2x128xf32>
    %38 = arith.mulf %33, %37 : vector<2x128xf32>
    %c0_14 = arith.constant 0 : index
    %c0_15 = arith.constant 0 : index
    %c0_16 = arith.constant 0 : index
    %39 = vector.load %arg3[%c0_14, %c0_15, %c0_16] : memref<1x2x512xbf16, #tpu.memory_space<vmem>>, vector<1x2x512xbf16>
    %40 = vector.shape_cast %39 : vector<1x2x512xbf16> to vector<2x512xbf16>
    %c0_17 = arith.constant 0 : index
    %c0_18 = arith.constant 0 : index
    %41 = vector.load %arg11[%c0_17, %c0_18] : memref<2x128xf32, #tpu.memory_space<vmem>>, vector<2x128xf32>
    %c0_19 = arith.constant 0 : index
    %c0_20 = arith.constant 0 : index
    %42 = vector.load %arg12[%c0_19, %c0_20] : memref<2x128xf32, #tpu.memory_space<vmem>>, vector<2x128xf32>
    %43 = arith.truncf %41 : vector<2x128xf32> to vector<2x128xbf16>
    %c0_21 = arith.constant 0 : index
    %c0_22 = arith.constant 0 : index
    %44 = vector.load %arg6[%c0_21, %c0_22] : memref<128x512xbf16, #tpu.memory_space<vmem>>, vector<128x512xbf16>
    %cst_23 = arith.constant dense<0.000000e+00> : vector<2x512xf32>
    %45 = tpu.matmul %43, %44, %cst_23 {dimension_numbers = #tpu.dot_dimension_numbers<[1], [0], [0], [1], [0, 0, 1, 1], [], []>} : vector<2x128xbf16>, vector<128x512xbf16>, vector<2x512xf32> -> vector<2x512xf32>
    %46 = arith.extf %40 : vector<2x512xbf16> to vector<2x512xf32>
    %47 = arith.addf %45, %46 : vector<2x512xf32>
    %48 = vector.extract_strided_slice %47 {offsets = [0, 0], sizes = [2, 128], strides = [1, 1]} : vector<2x512xf32> to vector<2x128xf32>
    %49 = arith.negf %48 : vector<2x128xf32>
    %50 = math.exp %49 : vector<2x128xf32>
    %cst_24 = arith.constant 1.000000e+00 : f32
    %51 = vector.broadcast %cst_24 : f32 to vector<2x128xf32>
    %52 = arith.addf %51, %50 : vector<2x128xf32>
    %53 = arith.divf %51, %52 : vector<2x128xf32>
    %54 = vector.extract_strided_slice %47 {offsets = [0, 128], sizes = [2, 128], strides = [1, 1]} : vector<2x512xf32> to vector<2x128xf32>
    %55 = arith.negf %54 : vector<2x128xf32>
    %56 = math.exp %55 : vector<2x128xf32>
    %cst_25 = arith.constant 1.000000e+00 : f32
    %57 = vector.broadcast %cst_25 : f32 to vector<2x128xf32>
    %58 = arith.addf %57, %56 : vector<2x128xf32>
    %59 = arith.divf %57, %58 : vector<2x128xf32>
    %60 = vector.extract_strided_slice %47 {offsets = [0, 256], sizes = [2, 128], strides = [1, 1]} : vector<2x512xf32> to vector<2x128xf32>
    %61 = math.tanh %60 : vector<2x128xf32>
    %62 = vector.extract_strided_slice %47 {offsets = [0, 384], sizes = [2, 128], strides = [1, 1]} : vector<2x512xf32> to vector<2x128xf32>
    %63 = arith.negf %62 : vector<2x128xf32>
    %64 = math.exp %63 : vector<2x128xf32>
    %cst_26 = arith.constant 1.000000e+00 : f32
    %65 = vector.broadcast %cst_26 : f32 to vector<2x128xf32>
    %66 = arith.addf %65, %64 : vector<2x128xf32>
    %67 = arith.divf %65, %66 : vector<2x128xf32>
    %68 = arith.mulf %59, %42 : vector<2x128xf32>
    %69 = arith.mulf %53, %61 : vector<2x128xf32>
    %70 = arith.addf %68, %69 : vector<2x128xf32>
    %71 = math.tanh %70 : vector<2x128xf32>
    %72 = arith.mulf %67, %71 : vector<2x128xf32>
    %73 = vector.broadcast %arg1 : i32 to vector<2x1xi32>
    %74 = arith.cmpi slt, %73, %3 : vector<2x1xi32>
    %75 = vector.broadcast %4 : i32 to vector<2x1xi32>
    %76 = arith.cmpi slt, %75, %3 : vector<2x1xi32>
    %cst_27 = arith.constant 0.000000e+00 : f32
    %77 = vector.shape_cast %74 : vector<2x1xi1> to vector<2x1xi1>
    %78 = vector.broadcast %77 : vector<2x1xi1> to vector<2x128xi1>
    %79 = vector.broadcast %cst_27 : f32 to vector<2x128xf32>
    %80 = arith.select %78, %38, %79 : vector<2x128xi1>, vector<2x128xf32>
    %c0_28 = arith.constant 0 : index
    %c0_29 = arith.constant 0 : index
    %c0_30 = arith.constant 0 : index
    %81 = vector.load %arg7[%c0_28, %c0_29, %c0_30] : memref<1x2x128xf32, #tpu.memory_space<vmem>>, vector<1x2x128xf32>
    %82 = vector.shape_cast %81 : vector<1x2x128xf32> to vector<2x128xf32>
    %83 = vector.shape_cast %80 : vector<2x128xf32> to vector<1x2x128xf32>
    tpu.vector_store %arg7[%c0_28, %c0_29, %c0_30], %83 {strides = array<i32>} : memref<1x2x128xf32, #tpu.memory_space<vmem>>, vector<1x2x128xf32>,
    %cst_31 = arith.constant 0.000000e+00 : f32
    %84 = vector.shape_cast %76 : vector<2x1xi1> to vector<2x1xi1>
    %85 = vector.broadcast %84 : vector<2x1xi1> to vector<2x128xi1>
    %86 = vector.broadcast %cst_31 : f32 to vector<2x128xf32>
    %87 = arith.select %85, %72, %86 : vector<2x128xi1>, vector<2x128xf32>
    %c0_32 = arith.constant 0 : index
    %c0_33 = arith.constant 0 : index
    %c0_34 = arith.constant 0 : index
    %88 = vector.load %arg8[%c0_32, %c0_33, %c0_34] : memref<1x2x128xf32, #tpu.memory_space<vmem>>, vector<1x2x128xf32>
    %89 = vector.shape_cast %88 : vector<1x2x128xf32> to vector<2x128xf32>
    %90 = vector.shape_cast %87 : vector<2x128xf32> to vector<1x2x128xf32>
    tpu.vector_store %arg8[%c0_32, %c0_33, %c0_34], %90 {strides = array<i32>} : memref<1x2x128xf32, #tpu.memory_space<vmem>>, vector<1x2x128xf32>,
    %c0_35 = arith.constant 0 : index
    %c0_36 = arith.constant 0 : index
    %91 = vector.load %arg9[%c0_35, %c0_36] : memref<2x128xf32, #tpu.memory_space<vmem>>, vector<2x128xf32>
    %92 = vector.shape_cast %74 : vector<2x1xi1> to vector<2x1xi1>
    %93 = vector.broadcast %92 : vector<2x1xi1> to vector<2x128xi1>
    %94 = arith.select %93, %38, %91 : vector<2x128xi1>, vector<2x128xf32>
    %c0_37 = arith.constant 0 : index
    %c0_38 = arith.constant 0 : index
    %95 = vector.load %arg9[%c0_37, %c0_38] : memref<2x128xf32, #tpu.memory_space<vmem>>, vector<2x128xf32>
    tpu.vector_store %arg9[%c0_37, %c0_38], %94 {strides = array<i32>} : memref<2x128xf32, #tpu.memory_space<vmem>>, vector<2x128xf32>,
    %c0_39 = arith.constant 0 : index
    %c0_40 = arith.constant 0 : index
    %96 = vector.load %arg10[%c0_39, %c0_40] : memref<2x128xf32, #tpu.memory_space<vmem>>, vector<2x128xf32>
    %97 = vector.shape_cast %74 : vector<2x1xi1> to vector<2x1xi1>
    %98 = vector.broadcast %97 : vector<2x1xi1> to vector<2x128xi1>
    %99 = arith.select %98, %36, %96 : vector<2x128xi1>, vector<2x128xf32>
    %c0_41 = arith.constant 0 : index
    %c0_42 = arith.constant 0 : index
    %100 = vector.load %arg10[%c0_41, %c0_42] : memref<2x128xf32, #tpu.memory_space<vmem>>, vector<2x128xf32>
    tpu.vector_store %arg10[%c0_41, %c0_42], %99 {strides = array<i32>} : memref<2x128xf32, #tpu.memory_space<vmem>>, vector<2x128xf32>,
    %c0_43 = arith.constant 0 : index
    %c0_44 = arith.constant 0 : index
    %101 = vector.load %arg11[%c0_43, %c0_44] : memref<2x128xf32, #tpu.memory_space<vmem>>, vector<2x128xf32>
    %102 = vector.shape_cast %76 : vector<2x1xi1> to vector<2x1xi1>
    %103 = vector.broadcast %102 : vector<2x1xi1> to vector<2x128xi1>
    %104 = arith.select %103, %72, %101 : vector<2x128xi1>, vector<2x128xf32>
    %c0_45 = arith.constant 0 : index
    %c0_46 = arith.constant 0 : index
    %105 = vector.load %arg11[%c0_45, %c0_46] : memref<2x128xf32, #tpu.memory_space<vmem>>, vector<2x128xf32>
    tpu.vector_store %arg11[%c0_45, %c0_46], %104 {strides = array<i32>} : memref<2x128xf32, #tpu.memory_space<vmem>>, vector<2x128xf32>,
    %c0_47 = arith.constant 0 : index
    %c0_48 = arith.constant 0 : index
    %106 = vector.load %arg12[%c0_47, %c0_48] : memref<2x128xf32, #tpu.memory_space<vmem>>, vector<2x128xf32>
    %107 = vector.shape_cast %76 : vector<2x1xi1> to vector<2x1xi1>
    %108 = vector.broadcast %107 : vector<2x1xi1> to vector<2x128xi1>
    %109 = arith.select %108, %70, %106 : vector<2x128xi1>, vector<2x128xf32>
    %c0_49 = arith.constant 0 : index
    %c0_50 = arith.constant 0 : index
    %110 = vector.load %arg12[%c0_49, %c0_50] : memref<2x128xf32, #tpu.memory_space<vmem>>, vector<2x128xf32>
    tpu.vector_store %arg12[%c0_49, %c0_50], %109 {strides = array<i32>} : memref<2x128xf32, #tpu.memory_space<vmem>>, vector<2x128xf32>,
    return
  }
  func.func @transform_0(%arg0: i32, %arg1: i32) -> (i32, i32, i32) {
    %c0_i32 = arith.constant 0 : i32
    %c0_i32_0 = arith.constant 0 : i32
    return %arg1, %arg0, %c0_i32 : i32, i32, i32
  }
  func.func @transform_1(%arg0: i32, %arg1: i32) -> (i32, i32, i32) {
    %c7_i32 = arith.constant 7 : i32
    %0 = arith.subi %c7_i32, %arg1 : i32
    %c1_i32 = arith.constant 1 : i32
    %c0_i32 = arith.constant 0 : i32
    return %0, %arg0, %c1_i32 : i32, i32, i32
  }
  func.func @transform_2(%arg0: i32, %arg1: i32) -> (i32, i32) {
    %c0_i32 = arith.constant 0 : i32
    %c0_i32_0 = arith.constant 0 : i32
    return %arg0, %c0_i32 : i32, i32
  }
  func.func @transform_3(%arg0: i32, %arg1: i32) -> (i32, i32) {
    %c0_i32 = arith.constant 0 : i32
    %c0_i32_0 = arith.constant 0 : i32
    %c0_i32_1 = arith.constant 0 : i32
    return %c0_i32, %c0_i32_0 : i32, i32
  }
  func.func @transform_4(%arg0: i32, %arg1: i32) -> (i32, i32) {
    %c0_i32 = arith.constant 0 : i32
    %c0_i32_0 = arith.constant 0 : i32
    %c0_i32_1 = arith.constant 0 : i32
    return %c0_i32, %c0_i32_0 : i32, i32
  }
  func.func @transform_5(%arg0: i32, %arg1: i32) -> (i32, i32, i32) {
    %c0_i32 = arith.constant 0 : i32
    %c0_i32_0 = arith.constant 0 : i32
    return %arg1, %arg0, %c0_i32 : i32, i32, i32
  }
  func.func @transform_6(%arg0: i32, %arg1: i32) -> (i32, i32, i32) {
    %c7_i32 = arith.constant 7 : i32
    %0 = arith.subi %c7_i32, %arg1 : i32
    %c0_i32 = arith.constant 0 : i32
    %c0_i32_0 = arith.constant 0 : i32
    return %0, %arg0, %c0_i32 : i32, i32, i32
  }
}

</mosaic_0001>

<llo_original>
// kernel: bilstm.2
$region0: #{bilstm.2}
  #allocation0 [shape = 'u32[]', space=smem, size = 0x4, offset = 0x4, fixed_abs, tag = 'smem constant byte address 0x4 - core index']
  #allocation1 [shape = 'u32[72,128]{1,0:T(1,128)}', space=vmem, size = 0x9000, scoped, tag = 'internal scratch']
  %s0 = inlined_call_operand.vmem [shape: f32[16,24], index: 0, kind: input, shape index: {}]
  %s1 = inlined_call_operand.vmem [shape: bf16[24,1024], index: 1, kind: input, shape index: {}]
  %s2 = inlined_call_operand.vmem [shape: f32[1,1024], index: 2, kind: input, shape index: {}]
  %s3 = inlined_call_operand.vmem [shape: bf16[16,1024], index: 3, kind: output, shape index: {}]
  %s4 = sld [smem:[#allocation0]]
  $region22: #{bilstm.2} parent=0
    _
  %s6 = ssub.s32 1, %s4
  %s7 = scalar_select 0, %s6, %s4
  // Predicated region
  $region2: #{bilstm.2} parent=0 // pred_check
    _
  $region3: #{bilstm.2} parent=0 // pred_check_branch
    %9 = sbr.rel (0) target = $region5
  $region4: #{bilstm.2} parent=0 // pred_region
    _
  $region5: #{bilstm.2} parent=0 // pred_fallthru
    _
  // Predicated region
  $region6: #{bilstm.2} parent=0 // pred_check
    _
  $region7: #{bilstm.2} parent=0 // pred_check_branch
    %11 = sbr.rel (0) target = $region9
  $region8: #{bilstm.2} parent=0 // pred_region
    _
  $region9: #{bilstm.2} parent=0 // pred_fallthru
    _
  // Predicated region
  $region10: #{bilstm.2} parent=0 // pred_check
    _
  $region11: #{bilstm.2} parent=0 // pred_check_branch
    %13 = sbr.rel (0) target = $region13
  $region12: #{bilstm.2} parent=0 // pred_region
    _
  $region13: #{bilstm.2} parent=0 // pred_fallthru
    _
  %v15 = vld [vmem:[%s0] sm:$0xff]
  %v16 = vld [vmem:[%s0 + $0x8] sm:$0xff]
  %v17 = vpack.c.bf16 %v16, %v15
  %v18 = vld [vmem:[%s1] sm:$0xff]
  %v19 = vld [vmem:[%s1 + $0x8] sm:$0xff]
  %v20 = vld [vmem:[%s1 + $0x10] sm:$0xff]
  %v21 = vld [vmem:[%s1 + $0x18] sm:$0xff]
  %v22 = vld [vmem:[%s1 + $0x20] sm:$0xff]
  %v23 = vld [vmem:[%s1 + $0x28] sm:$0xff]
  %v24 = vld [vmem:[%s1 + $0x30] sm:$0xff]
  %v25 = vld [vmem:[%s1 + $0x38] sm:$0xff]
  %v26 = vld [vmem:[%s1 + $0x40] sm:$0xff]
  %v27 = vld [vmem:[%s1 + $0x48] sm:$0xff]
  %v28 = vld [vmem:[%s1 + $0x50] sm:$0xff]
  %v29 = vld [vmem:[%s1 + $0x58] sm:$0xff]
  %v30 = vld [vmem:[%s2] sm:$0xff]
  %v32 = vperm.slane %v30, 0
  %v33 = vperm.slane %v30, 1
  %v34 = vperm.slane %v30, 2
  %v35 = vperm.slane %v30, 3
  %v36 = vperm.slane %v30, 4
  %v37 = vperm.slane %v30, 5
  %v38 = vperm.slane %v30, 6
  %v39 = vperm.slane %v30, 7
  %v60 = vunpack.c.l.b16 %v18
  %v61 = vunpack.c.h.b16 %v18
  %v62 = vunpack.c.l.b16 %v19
  %v63 = vunpack.c.h.b16 %v19
  %v64 = vunpack.c.l.b16 %v20
  %v65 = vunpack.c.h.b16 %v20
  %v66 = vunpack.c.l.b16 %v21
  %v67 = vunpack.c.h.b16 %v21
  %v68 = vunpack.c.l.b16 %v22
  %v69 = vunpack.c.h.b16 %v22
  %v70 = vunpack.c.l.b16 %v23
  %v71 = vunpack.c.h.b16 %v23
  %v72 = vunpack.c.l.b16 %v24
  %v73 = vunpack.c.h.b16 %v24
  %v74 = vunpack.c.l.b16 %v25
  %v75 = vunpack.c.h.b16 %v25
  %v76 = vunpack.c.l.b16 %v26
  %v77 = vunpack.c.h.b16 %v26
  %v78 = vunpack.c.l.b16 %v27
  %v79 = vunpack.c.h.b16 %v27
  %v80 = vunpack.c.l.b16 %v28
  %v81 = vunpack.c.h.b16 %v28
  %v82 = vunpack.c.l.b16 %v29
  %v83 = vunpack.c.h.b16 %v29
  %v84 = vpack.c.b16 %v68, %v60
  %v85 = vpack.c.b16 %v69, %v61
  %v86 = vpack.c.b16 %v70, %v62
  %v87 = vpack.c.b16 %v71, %v63
  %v88 = vpack.c.b16 %v72, %v64
  %v89 = vpack.c.b16 %v73, %v65
  %v90 = vpack.c.b16 %v74, %v66
  %v91 = vpack.c.b16 %v75, %v67
  %v92 = vpack.c.b16 %v76, %v76
  %v93 = vpack.c.b16 %v77, %v77
  %v94 = vpack.c.b16 %v78, %v78
  %v95 = vpack.c.b16 %v79, %v79
  %v96 = vpack.c.b16 %v80, %v80
  %v97 = vpack.c.b16 %v81, %v81
  %v98 = vpack.c.b16 %v82, %v82
  %v99 = vpack.c.b16 %v83, %v83
  %vm108 = vcmask 195584
  %v110 = vsel %vm108, %v17, 0
  %vm112 = vcmask 1043456
  %v114 = vsel %vm112, %v92, 0
  %v117 = vsel %vm112, %v93, 0
  %v120 = vsel %vm112, %v94, 0
  %v123 = vsel %vm112, %v95, 0
  %v126 = vsel %vm112, %v96, 0
  %v129 = vsel %vm112, %v97, 0
  %v132 = vsel %vm112, %v98, 0
  %v135 = vsel %vm112, %v99, 0
  %137 = vmatpush.bf16.msra.mxu0 0
  %138 = vmatpush.bf16.msra.mxu0 0
  %139 = vmatpush.bf16.msra.mxu0 0
  %140 = vmatpush.bf16.msra.mxu0 0
  %141 = vmatpush.bf16.msra.mxu0 0
  %142 = vmatpush.bf16.msra.mxu0 0
  %143 = vmatpush.bf16.msra.mxu0 %v114
  %144 = vmatpush.bf16.msra.mxu0 %v84
  %145 = vmatmul.bf16.gmra.mxu0 %v110
  %v146 = vpop.f32.mrf.mxu0
  %v147 = vadd.f32 %v32, %v146
  %v148 = vpop.f32.mrf.mxu0
  %v149 = vadd.f32 %v32, %v148
  %150 = vdwg.mxu0
  %151 = vmatpush.bf16.msra.mxu0 0
  %152 = vmatpush.bf16.msra.mxu0 0
  %153 = vmatpush.bf16.msra.mxu0 0
  %154 = vmatpush.bf16.msra.mxu0 0
  %155 = vmatpush.bf16.msra.mxu0 0
  %156 = vmatpush.bf16.msra.mxu0 0
  %157 = vmatpush.bf16.msra.mxu0 %v117
  %158 = vmatpush.bf16.msra.mxu0 %v85
  %159 = vmatmul.bf16.gmra.mxu0 %v110
  %v160 = vpop.f32.mrf.mxu0
  %v161 = vadd.f32 %v33, %v160
  %v162 = vpop.f32.mrf.mxu0
  %v163 = vadd.f32 %v33, %v162
  %164 = vdwg.mxu0
  %165 = vmatpush.bf16.msra.mxu0 0
  %166 = vmatpush.bf16.msra.mxu0 0
  %167 = vmatpush.bf16.msra.mxu0 0
  %168 = vmatpush.bf16.msra.mxu0 0
  %169 = vmatpush.bf16.msra.mxu0 0
  %170 = vmatpush.bf16.msra.mxu0 0
  %171 = vmatpush.bf16.msra.mxu0 %v120
  %172 = vmatpush.bf16.msra.mxu0 %v86
  %173 = vmatmul.bf16.gmra.mxu0 %v110
  %v174 = vpop.f32.mrf.mxu0
  %v175 = vadd.f32 %v34, %v174
  %v176 = vpop.f32.mrf.mxu0
  %v177 = vadd.f32 %v34, %v176
  %178 = vdwg.mxu0
  %179 = vmatpush.bf16.msra.mxu0 0
  %180 = vmatpush.bf16.msra.mxu0 0
  %181 = vmatpush.bf16.msra.mxu0 0
  %182 = vmatpush.bf16.msra.mxu0 0
  %183 = vmatpush.bf16.msra.mxu0 0
  %184 = vmatpush.bf16.msra.mxu0 0
  %185 = vmatpush.bf16.msra.mxu0 %v123
  %186 = vmatpush.bf16.msra.mxu0 %v87
  %187 = vmatmul.bf16.gmra.mxu0 %v110
  %v188 = vpop.f32.mrf.mxu0
  %v189 = vadd.f32 %v35, %v188
  %v190 = vpop.f32.mrf.mxu0
  %v191 = vadd.f32 %v35, %v190
  %192 = vdwg.mxu0
  %193 = vmatpush.bf16.msra.mxu0 0
  %194 = vmatpush.bf16.msra.mxu0 0
  %195 = vmatpush.bf16.msra.mxu0 0
  %196 = vmatpush.bf16.msra.mxu0 0
  %197 = vmatpush.bf16.msra.mxu0 0
  %198 = vmatpush.bf16.msra.mxu0 0
  %199 = vmatpush.bf16.msra.mxu0 %v126
  %200 = vmatpush.bf16.msra.mxu0 %v88
  %201 = vmatmul.bf16.gmra.mxu0 %v110
  %v202 = vpop.f32.mrf.mxu0
  %v203 = vadd.f32 %v36, %v202
  %v204 = vpop.f32.mrf.mxu0
  %v205 = vadd.f32 %v36, %v204
  %206 = vdwg.mxu0
  %207 = vmatpush.bf16.msra.mxu0 0
  %208 = vmatpush.bf16.msra.mxu0 0
  %209 = vmatpush.bf16.msra.mxu0 0
  %210 = vmatpush.bf16.msra.mxu0 0
  %211 = vmatpush.bf16.msra.mxu0 0
  %212 = vmatpush.bf16.msra.mxu0 0
  %213 = vmatpush.bf16.msra.mxu0 %v129
  %214 = vmatpush.bf16.msra.mxu0 %v89
  %215 = vmatmul.bf16.gmra.mxu0 %v110
  %v216 = vpop.f32.mrf.mxu0
  %v217 = vadd.f32 %v37, %v216
  %v218 = vpop.f32.mrf.mxu0
  %v219 = vadd.f32 %v37, %v218
  %220 = vdwg.mxu0
  %221 = vmatpush.bf16.msra.mxu0 0
  %222 = vmatpush.bf16.msra.mxu0 0
  %223 = vmatpush.bf16.msra.mxu0 0
  %224 = vmatpush.bf16.msra.mxu0 0
  %225 = vmatpush.bf16.msra.mxu0 0
  %226 = vmatpush.bf16.msra.mxu0 0
  %227 = vmatpush.bf16.msra.mxu0 %v132
  %228 = vmatpush.bf16.msra.mxu0 %v90
  %229 = vmatmul.bf16.gmra.mxu0 %v110
  %v230 = vpop.f32.mrf.mxu0
  %v231 = vadd.f32 %v38, %v230
  %v232 = vpop.f32.mrf.mxu0
  %v233 = vadd.f32 %v38, %v232
  %234 = vdwg.mxu0
  %235 = vmatpush.bf16.msra.mxu0 0
  %236 = vmatpush.bf16.msra.mxu0 0
  %237 = vmatpush.bf16.msra.mxu0 0
  %238 = vmatpush.bf16.msra.mxu0 0
  %239 = vmatpush.bf16.msra.mxu0 0
  %240 = vmatpush.bf16.msra.mxu0 0
  %241 = vmatpush.bf16.msra.mxu0 %v135
  %242 = vmatpush.bf16.msra.mxu0 %v91
  %243 = vmatmul.bf16.gmra.mxu0 %v110
  %v244 = vpop.f32.mrf.mxu0
  %v245 = vadd.f32 %v39, %v244
  %v246 = vpop.f32.mrf.mxu0
  %v247 = vadd.f32 %v39, %v246
  %248 = vdwg.mxu0
  %v249 = vpack.c.bf16 %v161, %v147
  %v250 = vpack.c.bf16 %v189, %v175
  %v251 = vpack.c.bf16 %v217, %v203
  %v252 = vpack.c.bf16 %v245, %v231
  %v253 = vpack.c.bf16 %v163, %v149
  %v254 = vpack.c.bf16 %v191, %v177
  %v255 = vpack.c.bf16 %v219, %v205
  %v256 = vpack.c.bf16 %v247, %v233
  %257 = vst [vmem:[%s3] sm:$0xff] %v249
  %258 = vst [vmem:[%s3 + $0x8] sm:$0xff] %v250
  %259 = vst [vmem:[%s3 + $0x10] sm:$0xff] %v251
  %260 = vst [vmem:[%s3 + $0x18] sm:$0xff] %v252
  %261 = vst [vmem:[%s3 + $0x20] sm:$0xff] %v253
  %262 = vst [vmem:[%s3 + $0x28] sm:$0xff] %v254
  %263 = vst [vmem:[%s3 + $0x30] sm:$0xff] %v255
  %264 = vst [vmem:[%s3 + $0x38] sm:$0xff] %v256
  // Predicated region
  $region14: #{bilstm.2} parent=0 // pred_check
    _
  $region15: #{bilstm.2} parent=0 // pred_check_branch
    %266 = sbr.rel (0) target = $region17
  $region16: #{bilstm.2} parent=0 // pred_region
    _
  $region17: #{bilstm.2} parent=0 // pred_fallthru
    _
  // Predicated region
  $region18: #{bilstm.2} parent=0 // pred_check
    _
  $region19: #{bilstm.2} parent=0 // pred_check_branch
    %268 = sbr.rel (0) target = $region21
  $region20: #{bilstm.2} parent=0 // pred_region
    _
  $region21: #{bilstm.2} parent=0 // pred_fallthru
    _

// kernel: bilstm.3
$region0: #{bilstm.3}
  #allocation0 [shape = 'u32[]', space=smem, size = 0x4, offset = 0x4, fixed_abs, tag = 'smem constant byte address 0x4 - core index']
  #allocation1 [shape = 'u32[72,128]{1,0:T(1,128)}', space=vmem, size = 0x9000, scoped, tag = 'internal scratch']
  #allocation2 [shape = 'f32[2,128]{1,0:T(2,128)}', space=vmem, size = 0x400, scoped, tag = 'scratch operand']
  #allocation3 [shape = 'f32[2,128]{1,0:T(2,128)}', space=vmem, size = 0x400, scoped, tag = 'scratch operand']
  #allocation4 [shape = 'f32[2,128]{1,0:T(2,128)}', space=vmem, size = 0x400, scoped, tag = 'scratch operand']
  #allocation5 [shape = 'f32[2,128]{1,0:T(2,128)}', space=vmem, size = 0x400, scoped, tag = 'scratch operand']
  %s0 = inlined_call_operand.vmem [shape: bf16[8,2,1024], index: 0, kind: input, shape index: {}, may-alias: {0,1}]
  %s1 = inlined_call_operand.vmem [shape: bf16[8,2,1024], index: 1, kind: input, shape index: {}, may-alias: {0,1}]
  %s2 = inlined_call_operand.vmem [shape: s32[2,1], index: 2, kind: input, shape index: {}]
  %s3 = inlined_call_operand.vmem [shape: bf16[128,512], index: 3, kind: input, shape index: {}]
  %s4 = inlined_call_operand.vmem [shape: bf16[128,512], index: 4, kind: input, shape index: {}]
  %s5 = inlined_call_operand.vmem [shape: f32[8,2,128], index: 5, kind: output, shape index: {0}]
  %s6 = inlined_call_operand.vmem [shape: f32[8,2,128], index: 6, kind: output, shape index: {1}]
  %7 = xla_tuple %s5, %s6
  %s8 = sld [smem:[#allocation0]]
  $region65: #{bilstm.3} parent=0
    _
  %s10 = ssub.s32 1, %s8
  %s11 = scalar_select 0, %s10, %s8
  loop: start=0, step=1, limit=10
  $region2: #{bilstm.3} parent=0 // loop_pre_header
    _
  $region3: #{bilstm.3} parent=0 // loop_header
    %s13 = sphi 0, %s17
    %p14 = scmp.ge.s32.totalorder %s13, 10
    %s20 = sphi 0, %s32
    %s21 = sphi 0, %s28
    %s22 = sphi 0, %s20
    %s23 = sphi 0, %s21
    %s24 = sphi 0, %s22
    %s25 = sphi 0, %s23
    %s37 = sphi 0, %s39
    %s40 = sphi 0, %s37
    %s41 = sphi 0, %s40
    %s57 = sphi 0, %s41
    %s67 = sphi 0, %s69
    %s70 = sphi 0, %s67
    %s71 = sphi 0, %s70
    %s87 = sphi 0, %s71
    %s93 = sphi 0, %s95
    %s96 = sphi 0, %s93
    %s97 = sphi 0, %s96
    %s113 = sphi 0, %s97
    %s117 = sphi 0, %s117
    %s119 = sphi 0, %s117
    %s120 = sphi 0, %s119
    %s134 = sphi 0, %s120
    %s138 = sphi 0, %s138
    %s140 = sphi 0, %s138
    %s141 = sphi 0, %s140
    %s155 = sphi 0, %s141
    %s163 = sphi 0, %s165
    %s166 = sphi 0, %s163
    %s167 = sphi 0, %s166
    %s183 = sphi 0, %s167
    %s193 = sphi 0, %s195
    %s196 = sphi 0, %s193
    %s197 = sphi 0, %s196
    %s213 = sphi 0, %s197
  $region4: #{bilstm.3} parent=0 // loop_header_branch
    %16 = sbr.rel (%p14) target = $region8
  $region5: #{bilstm.3} parent=0 // loop_body
    %s18 = ssub.s32 %s13, 1
    %s19 = ssub.s32 %s13, 2
    %s26 = sadd.s32 1, %s21
    %p27 = scmp.ge.s32.totalorder %s26, 8
    %s28 = scalar_select %p27, 0, %s26
    %s29 = sadd.s32 1, %s20
    %s30 = scalar_select %p27, %s29, %s20
    %p31 = scmp.ge.s32.totalorder %s30, 1
    %s32 = scalar_select %p31, 0, %s30
    %s33 = ssub.s32 %s21, %s28
    %s34 = ssub.s32 %s20, %s32
    %s35 = sor.u32 %s33, %s34
    %p36 = scmp.eq.s32.totalorder %s35, 0
    %s38 = sadd.s32 %s37, 1
    %s39 = scalar_select %p36, %s37, %s38
    %p42 = pneg %p36
    %p43 = scmp.eq.s32.totalorder %s13, 7
    %p44 = por %p42, %p43
    %p45 = scmp.ne.s32.totalorder %s37, %s40
    %p46 = scmp.eq.s32.totalorder %s13, 0
    %p47 = por %p45, %p46
    %p48 = scmp.ne.s32.totalorder %s37, %s40
    %p49 = scmp.eq.s32.totalorder %s18, 7
    %p50 = por %p48, %p49
    %p51 = scmp.ne.s32.totalorder %s40, %s41
    %p52 = scmp.eq.s32.totalorder %s18, 0
    %p53 = por %p51, %p52
    %p54 = scmp.ne.s32.totalorder %s40, %s41
    %p55 = scmp.eq.s32.totalorder %s19, 7
    %p56 = por %p54, %p55
    %p58 = scmp.ne.s32.totalorder %s41, %s57
    %p59 = scmp.eq.s32.totalorder %s19, 0
    %p60 = por %p58, %p59
    %s61 = ssub.s32 7, %s21
    %s62 = ssub.s32 7, %s28
    %s63 = ssub.s32 %s61, %s62
    %s64 = ssub.s32 %s20, %s32
    %s65 = sor.u32 %s63, %s64
    %p66 = scmp.eq.s32.totalorder %s65, 0
    %s68 = sadd.s32 %s67, 1
    %s69 = scalar_select %p66, %s67, %s68
    %p72 = pneg %p66
    %p73 = scmp.eq.s32.totalorder %s13, 7
    %p74 = por %p72, %p73
    %p75 = scmp.ne.s32.totalorder %s67, %s70
    %p76 = scmp.eq.s32.totalorder %s13, 0
    %p77 = por %p75, %p76
    %p78 = scmp.ne.s32.totalorder %s67, %s70
    %p79 = scmp.eq.s32.totalorder %s18, 7
    %p80 = por %p78, %p79
    %p81 = scmp.ne.s32.totalorder %s70, %s71
    %p82 = scmp.eq.s32.totalorder %s18, 0
    %p83 = por %p81, %p82
    %p84 = scmp.ne.s32.totalorder %s70, %s71
    %p85 = scmp.eq.s32.totalorder %s19, 7
    %p86 = por %p84, %p85
    %p88 = scmp.ne.s32.totalorder %s71, %s87
    %p89 = scmp.eq.s32.totalorder %s19, 0
    %p90 = por %p88, %p89
    %s91 = ssub.s32 %s20, %s32
    %p92 = scmp.eq.s32.totalorder %s91, 0
    %s94 = sadd.s32 %s93, 1
    %s95 = scalar_select %p92, %s93, %s94
    %p98 = pneg %p92
    %p99 = scmp.eq.s32.totalorder %s13, 7
    %p100 = por %p98, %p99
    %p101 = scmp.ne.s32.totalorder %s93, %s96
    %p102 = scmp.eq.s32.totalorder %s13, 0
    %p103 = por %p101, %p102
    %p104 = scmp.ne.s32.totalorder %s93, %s96
    %p105 = scmp.eq.s32.totalorder %s18, 7
    %p106 = por %p104, %p105
    %p107 = scmp.ne.s32.totalorder %s96, %s97
    %p108 = scmp.eq.s32.totalorder %s18, 0
    %p109 = por %p107, %p108
    %p110 = scmp.ne.s32.totalorder %s96, %s97
    %p111 = scmp.eq.s32.totalorder %s19, 7
    %p112 = por %p110, %p111
    %p114 = scmp.ne.s32.totalorder %s97, %s113
    %p115 = scmp.eq.s32.totalorder %s19, 0
    %p116 = por %p114, %p115
    %s118 = sadd.s32 %s117, 1
    %p121 = scmp.eq.s32.totalorder %s13, 7
    %p122 = scmp.ne.s32.totalorder %s117, %s119
    %p123 = scmp.eq.s32.totalorder %s13, 0
    %p124 = por %p122, %p123
    %p125 = scmp.ne.s32.totalorder %s117, %s119
    %p126 = scmp.eq.s32.totalorder %s18, 7
    %p127 = por %p125, %p126
    %p128 = scmp.ne.s32.totalorder %s119, %s120
    %p129 = scmp.eq.s32.totalorder %s18, 0
    %p130 = por %p128, %p129
    %p131 = scmp.ne.s32.totalorder %s119, %s120
    %p132 = scmp.eq.s32.totalorder %s19, 7
    %p133 = por %p131, %p132
    %p135 = scmp.ne.s32.totalorder %s120, %s134
    %p136 = scmp.eq.s32.totalorder %s19, 0
    %p137 = por %p135, %p136
    %s139 = sadd.s32 %s138, 1
    %p142 = scmp.eq.s32.totalorder %s13, 7
    %p143 = scmp.ne.s32.totalorder %s138, %s140
    %p144 = scmp.eq.s32.totalorder %s13, 0
    %p145 = por %p143, %p144
    %p146 = scmp.ne.s32.totalorder %s138, %s140
    %p147 = scmp.eq.s32.totalorder %s18, 7
    %p148 = por %p146, %p147
    %p149 = scmp.ne.s32.totalorder %s140, %s141
    %p150 = scmp.eq.s32.totalorder %s18, 0
    %p151 = por %p149, %p150
    %p152 = scmp.ne.s32.totalorder %s140, %s141
    %p153 = scmp.eq.s32.totalorder %s19, 7
    %p154 = por %p152, %p153
    %p156 = scmp.ne.s32.totalorder %s141, %s155
    %p157 = scmp.eq.s32.totalorder %s19, 0
    %p158 = por %p156, %p157
    %s159 = ssub.s32 %s21, %s28
    %s160 = ssub.s32 %s20, %s32
    %s161 = sor.u32 %s159, %s160
    %p162 = scmp.eq.s32.totalorder %s161, 0
    %s164 = sadd.s32 %s163, 1
    %s165 = scalar_select %p162, %s163, %s164
    %p168 = pneg %p162
    %p169 = scmp.eq.s32.totalorder %s13, 7
    %p170 = por %p168, %p169
    %p171 = scmp.ne.s32.totalorder %s163, %s166
    %p172 = scmp.eq.s32.totalorder %s13, 0
    %p173 = por %p171, %p172
    %p174 = scmp.ne.s32.totalorder %s163, %s166
    %p175 = scmp.eq.s32.totalorder %s18, 7
    %p176 = por %p174, %p175
    %p177 = scmp.ne.s32.totalorder %s166, %s167
    %p178 = scmp.eq.s32.totalorder %s18, 0
    %p179 = por %p177, %p178
    %p180 = scmp.ne.s32.totalorder %s166, %s167
    %p181 = scmp.eq.s32.totalorder %s19, 7
    %p182 = por %p180, %p181
    %p184 = scmp.ne.s32.totalorder %s167, %s183
    %p185 = scmp.eq.s32.totalorder %s19, 0
    %p186 = por %p184, %p185
    %s187 = ssub.s32 7, %s21
    %s188 = ssub.s32 7, %s28
    %s189 = ssub.s32 %s187, %s188
    %s190 = ssub.s32 %s20, %s32
    %s191 = sor.u32 %s189, %s190
    %p192 = scmp.eq.s32.totalorder %s191, 0
    %s194 = sadd.s32 %s193, 1
    %s195 = scalar_select %p192, %s193, %s194
    %p198 = pneg %p192
    %p199 = scmp.eq.s32.totalorder %s13, 7
    %p200 = por %p198, %p199
    %p201 = scmp.ne.s32.totalorder %s193, %s196
    %p202 = scmp.eq.s32.totalorder %s13, 0
    %p203 = por %p201, %p202
    %p204 = scmp.ne.s32.totalorder %s193, %s196
    %p205 = scmp.eq.s32.totalorder %s18, 7
    %p206 = por %p204, %p205
    %p207 = scmp.ne.s32.totalorder %s196, %s197
    %p208 = scmp.eq.s32.totalorder %s18, 0
    %p209 = por %p207, %p208
    %p210 = scmp.ne.s32.totalorder %s196, %s197
    %p211 = scmp.eq.s32.totalorder %s19, 7
    %p212 = por %p210, %p211
    %p214 = scmp.ne.s32.totalorder %s197, %s213
    %p215 = scmp.eq.s32.totalorder %s19, 0
    %p216 = por %p214, %p215
    %p217 = scmp.le.s32.totalorder 1, %s13
    %p218 = scmp.lt.s32.totalorder %s13, 9
    %p219 = pnand %p217, %p218
    %p220 = pneg %p219
    // Predicated region
    $region9: #{bilstm.3} parent=5 // pred_check
      _
    $region10: #{bilstm.3} parent=5 // pred_check_branch
      %222 = sbr.rel (%p219) target = $region12
    $region11: #{bilstm.3} parent=5 // pred_region
      %s223 = ssub.s32 %s13, 1
      // Predicated region
      $region13: #{bilstm.3} parent=11 // pred_check
        %p224 = pneg %p109
      $region14: #{bilstm.3} parent=11 // pred_check_branch
        %226 = sbr.rel (%p224) target = $region16
      $region15: #{bilstm.3} parent=11 // pred_region
        %p227 = scmp.lt.s32.totalorder %s22, 0
        %s228 = scalar_select %p227, %s22, 0
        %s229 = smul.addr %s228, 2
        %s230 = scalar_lea.vmem %s2, %s229
      $region16: #{bilstm.3} parent=11 // pred_fallthru
        _
      // Predicated region
      $region17: #{bilstm.3} parent=11 // pred_check
        %p231 = pneg %p130
      $region18: #{bilstm.3} parent=11 // pred_check_branch
        %233 = sbr.rel (%p231) target = $region20
      $region19: #{bilstm.3} parent=11 // pred_region
        _
      $region20: #{bilstm.3} parent=11 // pred_fallthru
        _
      // Predicated region
      $region21: #{bilstm.3} parent=11 // pred_check
        %p234 = pneg %p151
      $region22: #{bilstm.3} parent=11 // pred_check_branch
        %236 = sbr.rel (%p234) target = $region24
      $region23: #{bilstm.3} parent=11 // pred_region
        _
      $region24: #{bilstm.3} parent=11 // pred_fallthru
        _
    $region12: #{bilstm.3} parent=5 // pred_fallthru
      _
    %p237 = scmp.lt.s32.totalorder %s13, 8
    // Predicated region
    $region25: #{bilstm.3} parent=5 // pred_check
      %p238 = pneg %p237
    $region26: #{bilstm.3} parent=5 // pred_check_branch
      %240 = sbr.rel (%p238) target = $region28
    $region27: #{bilstm.3} parent=5 // pred_region
      // Predicated region
      $region29: #{bilstm.3} parent=27 // pred_check
        %p241 = pneg %p47
      $region30: #{bilstm.3} parent=27 // pred_check_branch
        %243 = sbr.rel (%p241) target = $region32
      $region31: #{bilstm.3} parent=27 // pred_region
        %p244 = scmp.lt.s32.totalorder %s21, 7
        %s245 = scalar_select %p244, %s21, 7
        %p246 = scmp.lt.s32.totalorder %s20, 0
        %s247 = scalar_select %p246, %s20, 0
        %s248 = smul.addr %s247, 8
        %s249 = smul.addr %s245, 8
        %s250 = sadd.s32 %s248, %s249
        %s251 = scalar_lea.vmem %s0, %s250
      $region32: #{bilstm.3} parent=27 // pred_fallthru
        _
      // Predicated region
      $region33: #{bilstm.3} parent=27 // pred_check
        %p252 = pneg %p77
      $region34: #{bilstm.3} parent=27 // pred_check_branch
        %254 = sbr.rel (%p252) target = $region36
      $region35: #{bilstm.3} parent=27 // pred_region
        %s255 = ssub.s32 7, %s21
        %p256 = scmp.lt.s32.totalorder %s255, 7
        %s257 = scalar_select %p256, %s255, 7
        %p258 = scmp.lt.s32.totalorder %s20, 0
        %s259 = scalar_select %p258, %s20, 0
        %s260 = smul.addr %s259, 8
        %s261 = sadd.s32 4, %s260
        %s262 = smul.addr %s257, 8
        %s263 = sadd.s32 %s261, %s262
        %s264 = scalar_lea.vmem %s1, %s263
        %s265 = ssub.s32 7, %s21
      $region36: #{bilstm.3} parent=27 // pred_fallthru
        _
    $region28: #{bilstm.3} parent=5 // pred_fallthru
      _
    %p266 = scmp.le.s32.totalorder 1, %s13
    %p267 = scmp.lt.s32.totalorder %s13, 9
    %p268 = pnand %p266, %p267
    %p269 = pneg %p268
    // Predicated region
    $region37: #{bilstm.3} parent=5 // pred_check
      _
    $region38: #{bilstm.3} parent=5 // pred_check_branch
      %271 = sbr.rel (%p268) target = $region40
    $region39: #{bilstm.3} parent=5 // pred_region
      %s272 = ssub.s32 %s13, 1
      %p273 = scmp.lt.s32.totalorder %s23, 7
      %s274 = scalar_select %p273, %s23, 7
      %p275 = scmp.lt.s32.totalorder %s22, 0
      %s276 = scalar_select %p275, %s22, 0
      %s277 = smul.addr %s276, 8
      %s278 = smul.addr %s274, 8
      %s279 = sadd.s32 %s277, %s278
      %s280 = scalar_lea.vmem %s0, %s279
      %p281 = pneg %p53
      %p282 = pneg %p50
      %s283 = ssub.s32 7, %s23
      %p284 = scmp.lt.s32.totalorder %s283, 7
      %s285 = scalar_select %p284, %s283, 7
      %p286 = scmp.lt.s32.totalorder %s22, 0
      %s287 = scalar_select %p286, %s22, 0
      %s288 = smul.addr %s287, 8
      %s289 = sadd.s32 4, %s288
      %s290 = smul.addr %s285, 8
      %s291 = sadd.s32 %s289, %s290
      %s292 = scalar_lea.vmem %s1, %s291
      %p293 = pneg %p83
      %p294 = pneg %p80
      %p295 = scmp.lt.s32.totalorder %s22, 0
      %s296 = scalar_select %p295, %s22, 0
      %s297 = smul.addr %s296, 2
      %s298 = scalar_lea.vmem %s2, %s297
      %p299 = pneg %p109
      %p300 = pneg %p106
      %p301 = pneg %p130
      %p302 = pneg %p127
      %p303 = pneg %p151
      %p304 = pneg %p148
      %p305 = pneg %p179
      %p306 = pneg %p176
      %p307 = scmp.lt.s32.totalorder %s23, 7
      %s308 = scalar_select %p307, %s23, 7
      %p309 = scmp.lt.s32.totalorder %s22, 0
      %s310 = scalar_select %p309, %s22, 0
      %s311 = sadd.s32 %s310, %s308
      %s312 = smul.addr %s311, 2
      %s313 = scalar_lea.vmem %s5, %s312
      %p314 = pneg %p209
      %p315 = pneg %p206
      %s316 = ssub.s32 7, %s23
      %p317 = scmp.lt.s32.totalorder %s316, 7
      %s318 = scalar_select %p317, %s316, 7
      %p319 = scmp.lt.s32.totalorder %s22, 0
      %s320 = scalar_select %p319, %s22, 0
      %s321 = sadd.s32 %s320, %s318
      %s322 = smul.addr %s321, 2
      %s323 = scalar_lea.vmem %s6, %s322
      %p324 = scmp.lt.s32.totalorder %s23, 7
      %s325 = scalar_select %p324, %s23, 7
      %p326 = scmp.lt.s32.totalorder %s22, 0
      %s327 = scalar_select %p326, %s22, 0
      %s328 = smul.addr %s327, 8
      %s329 = smul.addr %s325, 8
      %s330 = sadd.s32 %s328, %s329
      %s331 = scalar_lea.vmem %s0, %s330
      %s332 = ssub.s32 7, %s23
      %p333 = scmp.lt.s32.totalorder %s332, 7
      %s334 = scalar_select %p333, %s332, 7
      %p335 = scmp.lt.s32.totalorder %s22, 0
      %s336 = scalar_select %p335, %s22, 0
      %s337 = smul.addr %s336, 8
      %s338 = sadd.s32 4, %s337
      %s339 = smul.addr %s334, 8
      %s340 = sadd.s32 %s338, %s339
      %s341 = scalar_lea.vmem %s1, %s340
      %s342 = ssub.s32 7, %s23
      %p343 = scmp.lt.s32.totalorder %s22, 0
      %s344 = scalar_select %p343, %s22, 0
      %s345 = smul.addr %s344, 2
      %s346 = scalar_lea.vmem %s2, %s345
      %p347 = scmp.lt.s32.totalorder %s23, 7
      %s348 = scalar_select %p347, %s23, 7
      %p349 = scmp.lt.s32.totalorder %s22, 0
      %s350 = scalar_select %p349, %s22, 0
      %s351 = sadd.s32 %s350, %s348
      %s352 = smul.addr %s351, 2
      %s353 = scalar_lea.vmem %s5, %s352
      %s354 = ssub.s32 7, %s23
      %p355 = scmp.lt.s32.totalorder %s354, 7
      %s356 = scalar_select %p355, %s354, 7
      %p357 = scmp.lt.s32.totalorder %s22, 0
      %s358 = scalar_select %p357, %s22, 0
      %s359 = sadd.s32 %s358, %s356
      %s360 = smul.addr %s359, 2
      %s361 = scalar_lea.vmem %s6, %s360
      %s362 = ssub.s32 7, %s23
      %p363 = scmp.eq.s32.totalorder %s23, 0
      // Predicated region
      $region41: #{bilstm.3} parent=39 // pred_check
        %p364 = pneg %p363
      $region42: #{bilstm.3} parent=39 // pred_check_branch
        %366 = sbr.rel (%p364) target = $region44
      $region43: #{bilstm.3} parent=39 // pred_region
        %367 = vst [vmem:[#allocation2] sm:$0x3] 0.0
        %368 = vst [vmem:[#allocation3] sm:$0x3] 0.0
        %369 = vst [vmem:[#allocation4] sm:$0x3] 0.0
        %370 = vst [vmem:[#allocation5] sm:$0x3] 0.0
      $region44: #{bilstm.3} parent=39 // pred_fallthru
        _
      %v371 = vld [vmem:[%s346] sm:$0x3]
      %s372 = ssub.s32 7, %s23
      %v373 = vld [vmem:[%s331] sm:$0xf]
      %v374 = vld [vmem:[#allocation2] sm:$0x3]
      %v375 = vld [vmem:[#allocation3] sm:$0x3]
      %v376 = vpack.c.bf16 %v374, %v374
      %v377 = vld [vmem:[%s3] sm:$0xff]
      %v378 = vld [vmem:[%s3 + $0x8] sm:$0xff]
      %v379 = vld [vmem:[%s3 + $0x10] sm:$0xff]
      %v380 = vld [vmem:[%s3 + $0x18] sm:$0xff]
      %v381 = vld [vmem:[%s3 + $0x20] sm:$0xff]
      %v382 = vld [vmem:[%s3 + $0x28] sm:$0xff]
      %v383 = vld [vmem:[%s3 + $0x30] sm:$0xff]
      %v384 = vld [vmem:[%s3 + $0x38] sm:$0xff]
      %v385 = vld [vmem:[%s3 + $0x40] sm:$0xff]
      %v386 = vld [vmem:[%s3 + $0x48] sm:$0xff]
      %v387 = vld [vmem:[%s3 + $0x50] sm:$0xff]
      %v388 = vld [vmem:[%s3 + $0x58] sm:$0xff]
      %v389 = vld [vmem:[%s3 + $0x60] sm:$0xff]
      %v390 = vld [vmem:[%s3 + $0x68] sm:$0xff]
      %v391 = vld [vmem:[%s3 + $0x70] sm:$0xff]
      %v392 = vld [vmem:[%s3 + $0x78] sm:$0xff]
      %v393 = vld [vmem:[%s3 + $0x80] sm:$0xff]
      %v394 = vld [vmem:[%s3 + $0x88] sm:$0xff]
      %v395 = vld [vmem:[%s3 + $0x90] sm:$0xff]
      %v396 = vld [vmem:[%s3 + $0x98] sm:$0xff]
      %v397 = vld [vmem:[%s3 + $0xa0] sm:$0xff]
      %v398 = vld [vmem:[%s3 + $0xa8] sm:$0xff]
      %v399 = vld [vmem:[%s3 + $0xb0] sm:$0xff]
      %v400 = vld [vmem:[%s3 + $0xb8] sm:$0xff]
      %v401 = vld [vmem:[%s3 + $0xc0] sm:$0xff]
      %v402 = vld [vmem:[%s3 + $0xc8] sm:$0xff]
      %v403 = vld [vmem:[%s3 + $0xd0] sm:$0xff]
      %v404 = vld [vmem:[%s3 + $0xd8] sm:$0xff]
      %v405 = vld [vmem:[%s3 + $0xe0] sm:$0xff]
      %v406 = vld [vmem:[%s3 + $0xe8] sm:$0xff]
      %v407 = vld [vmem:[%s3 + $0xf0] sm:$0xff]
      %v408 = vld [vmem:[%s3 + $0xf8] sm:$0xff]
      %v409 = vunpack.c.l.bf16 %v373
      %v442 = vunpack.c.l.b16 %v377
      %v443 = vunpack.c.h.b16 %v377
      %v444 = vunpack.c.l.b16 %v378
      %v445 = vunpack.c.h.b16 %v378
      %v446 = vunpack.c.l.b16 %v379
      %v447 = vunpack.c.h.b16 %v379
      %v448 = vunpack.c.l.b16 %v380
      %v449 = vunpack.c.h.b16 %v380
      %v450 = vunpack.c.l.b16 %v381
      %v451 = vunpack.c.h.b16 %v381
      %v452 = vunpack.c.l.b16 %v382
      %v453 = vunpack.c.h.b16 %v382
      %v454 = vunpack.c.l.b16 %v383
      %v455 = vunpack.c.h.b16 %v383
      %v456 = vunpack.c.l.b16 %v384
      %v457 = vunpack.c.h.b16 %v384
      %v458 = vunpack.c.l.b16 %v385
      %v459 = vunpack.c.h.b16 %v385
      %v460 = vunpack.c.l.b16 %v386
      %v461 = vunpack.c.h.b16 %v386
      %v462 = vunpack.c.l.b16 %v387
      %v463 = vunpack.c.h.b16 %v387
      %v464 = vunpack.c.l.b16 %v388
      %v465 = vunpack.c.h.b16 %v388
      %v466 = vunpack.c.l.b16 %v389
      %v467 = vunpack.c.h.b16 %v389
      %v468 = vunpack.c.l.b16 %v390
      %v469 = vunpack.c.h.b16 %v390
      %v470 = vunpack.c.l.b16 %v391
      %v471 = vunpack.c.h.b16 %v391
      %v472 = vunpack.c.l.b16 %v392
      %v473 = vunpack.c.h.b16 %v392
      %v474 = vunpack.c.l.b16 %v393
      %v475 = vunpack.c.h.b16 %v393
      %v476 = vunpack.c.l.b16 %v394
      %v477 = vunpack.c.h.b16 %v394
      %v478 = vunpack.c.l.b16 %v395
      %v479 = vunpack.c.h.b16 %v395
      %v480 = vunpack.c.l.b16 %v396
      %v481 = vunpack.c.h.b16 %v396
      %v482 = vunpack.c.l.b16 %v397
      %v483 = vunpack.c.h.b16 %v397
      %v484 = vunpack.c.l.b16 %v398
      %v485 = vunpack.c.h.b16 %v398
      %v486 = vunpack.c.l.b16 %v399
      %v487 = vunpack.c.h.b16 %v399
      %v488 = vunpack.c.l.b16 %v400
      %v489 = vunpack.c.h.b16 %v400
      %v490 = vunpack.c.l.b16 %v401
      %v491 = vunpack.c.h.b16 %v401
      %v492 = vunpack.c.l.b16 %v402
      %v493 = vunpack.c.h.b16 %v402
      %v494 = vunpack.c.l.b16 %v403
      %v495 = vunpack.c.h.b16 %v403
      %v496 = vunpack.c.l.b16 %v404
      %v497 = vunpack.c.h.b16 %v404
      %v498 = vunpack.c.l.b16 %v405
      %v499 = vunpack.c.h.b16 %v405
      %v500 = vunpack.c.l.b16 %v406
      %v501 = vunpack.c.h.b16 %v406
      %v502 = vunpack.c.l.b16 %v407
      %v503 = vunpack.c.h.b16 %v407
      %v504 = vunpack.c.l.b16 %v408
      %v505 = vunpack.c.h.b16 %v408
      %v506 = vpack.c.b16 %v446, %v442
      %v507 = vpack.c.b16 %v447, %v443
      %v508 = vpack.c.b16 %v448, %v444
      %v509 = vpack.c.b16 %v449, %v445
      %v510 = vpack.c.b16 %v454, %v450
      %v511 = vpack.c.b16 %v455, %v451
      %v512 = vpack.c.b16 %v456, %v452
      %v513 = vpack.c.b16 %v457, %v453
      %v514 = vpack.c.b16 %v462, %v458
      %v515 = vpack.c.b16 %v463, %v459
      %v516 = vpack.c.b16 %v464, %v460
      %v517 = vpack.c.b16 %v465, %v461
      %v518 = vpack.c.b16 %v470, %v466
      %v519 = vpack.c.b16 %v471, %v467
      %v520 = vpack.c.b16 %v472, %v468
      %v521 = vpack.c.b16 %v473, %v469
      %v522 = vpack.c.b16 %v478, %v474
      %v523 = vpack.c.b16 %v479, %v475
      %v524 = vpack.c.b16 %v480, %v476
      %v525 = vpack.c.b16 %v481, %v477
      %v526 = vpack.c.b16 %v486, %v482
      %v527 = vpack.c.b16 %v487, %v483
      %v528 = vpack.c.b16 %v488, %v484
      %v529 = vpack.c.b16 %v489, %v485
      %v530 = vpack.c.b16 %v494, %v490
      %v531 = vpack.c.b16 %v495, %v491
      %v532 = vpack.c.b16 %v496, %v492
      %v533 = vpack.c.b16 %v497, %v493
      %v534 = vpack.c.b16 %v502, %v498
      %v535 = vpack.c.b16 %v503, %v499
      %v536 = vpack.c.b16 %v504, %v500
      %v537 = vpack.c.b16 %v505, %v501
      %571 = vst [vmem:[#allocation1] ss:$4 sm:$0xff] %v409
      %v572 = vld.sshfl [vmem:[#allocation1] sm:$0xff pattern:$0x73625140]
      %v573 = vld.sshfl [vmem:[#allocation1 + $0x8] sm:$0xff pattern:$0x73625140]
      %v574 = vld.sshfl [vmem:[#allocation1 + $0x10] sm:$0xff pattern:$0x73625140]
      %v575 = vld.sshfl [vmem:[#allocation1 + $0x18] sm:$0xff pattern:$0x73625140]
      %580 = vmatpush.bf16.msra.mxu0 %v534
      %581 = vmatpush.bf16.msra.mxu0 %v530
      %582 = vmatpush.bf16.msra.mxu0 %v526
      %583 = vmatpush.bf16.msra.mxu0 %v522
      %584 = vmatpush.bf16.msra.mxu0 %v518
      %585 = vmatpush.bf16.msra.mxu0 %v514
      %586 = vmatpush.bf16.msra.mxu0 %v510
      %587 = vmatpush.bf16.msra.mxu0 %v506
      %588 = vmatmul.bf16.gmra.mxu0 %v376
      %v589 = vpop.f32.mrf.mxu0
      %v590 = vadd.f32 %v572, %v589
      %v591 = vpop.f32.mrf.mxu0
      %592 = vdwg.mxu0
      %593 = vmatpush.bf16.msra.mxu0 %v535
      %594 = vmatpush.bf16.msra.mxu0 %v531
      %595 = vmatpush.bf16.msra.mxu0 %v527
      %596 = vmatpush.bf16.msra.mxu0 %v523
      %597 = vmatpush.bf16.msra.mxu0 %v519
      %598 = vmatpush.bf16.msra.mxu0 %v515
      %599 = vmatpush.bf16.msra.mxu0 %v511
      %600 = vmatpush.bf16.msra.mxu0 %v507
      %601 = vmatmul.bf16.gmra.mxu0 %v376
      %v602 = vpop.f32.mrf.mxu0
      %v603 = vadd.f32 %v573, %v602
      %v604 = vpop.f32.mrf.mxu0
      %605 = vdwg.mxu0
      %606 = vmatpush.bf16.msra.mxu0 %v536
      %607 = vmatpush.bf16.msra.mxu0 %v532
      %608 = vmatpush.bf16.msra.mxu0 %v528
      %609 = vmatpush.bf16.msra.mxu0 %v524
      %610 = vmatpush.bf16.msra.mxu0 %v520
      %611 = vmatpush.bf16.msra.mxu0 %v516
      %612 = vmatpush.bf16.msra.mxu0 %v512
      %613 = vmatpush.bf16.msra.mxu0 %v508
      %614 = vmatmul.bf16.gmra.mxu0 %v376
      %v615 = vpop.f32.mrf.mxu0
      %v616 = vadd.f32 %v574, %v615
      %v617 = vpop.f32.mrf.mxu0
      %618 = vdwg.mxu0
      %619 = vmatpush.bf16.msra.mxu0 %v537
      %620 = vmatpush.bf16.msra.mxu0 %v533
      %621 = vmatpush.bf16.msra.mxu0 %v529
      %622 = vmatpush.bf16.msra.mxu0 %v525
      %623 = vmatpush.bf16.msra.mxu0 %v521
      %624 = vmatpush.bf16.msra.mxu0 %v517
      %625 = vmatpush.bf16.msra.mxu0 %v513
      %626 = vmatpush.bf16.msra.mxu0 %v509
      %627 = vmatmul.bf16.gmra.mxu0 %v376
      %v628 = vpop.f32.mrf.mxu0
      %v629 = vadd.f32 %v575, %v628
      %v630 = vpop.f32.mrf.mxu0
      %631 = vdwg.mxu0
      %v632 = vxor.u32 %v590, 2147483648
      %v633 = vmul.f32 %v632, 1.442695
      %v634 = vpow.pop %v633
      %v635 = vadd.f32 %v634, 1.0
      %v636 = vrcp.pop %v635
      %v637 = vmul.f32 %v635, %v636
      %v638 = vsub.f32 1.0, %v637
      %v639 = vmul.f32 %v636, %v638
      %v640 = vadd.f32 %v636, %v639
      %vm641 = vweird.f32 %v635
      %vm642 = vweird.f32 %v636
      %vm643 = vmor %vm641, %vm642
      %v644 = vsel %vm643, %v636, %v640
      %v645 = vand.u32 2147483647, %v635
      %vm646 = vcmp.eq.f32.partialorder %v645, 8.507059e+37
      %v647 = vand.u32 %v635, 2147483648
      %v648 = vor.u32 1.1754944e-38, %v647
      %v649 = vsel %vm646, %v648, %v644
      %v650 = vmul.f32 1.0, %v649
      %v651 = vxor.u32 %v603, 2147483648
      %v652 = vmul.f32 %v651, 1.442695
      %v653 = vpow.pop %v652
      %v654 = vadd.f32 %v653, 1.0
      %v655 = vrcp.pop %v654
      %v656 = vmul.f32 %v654, %v655
      %v657 = vsub.f32 1.0, %v656
      %v658 = vmul.f32 %v655, %v657
      %v659 = vadd.f32 %v655, %v658
      %vm660 = vweird.f32 %v654
      %vm661 = vweird.f32 %v655
      %vm662 = vmor %vm660, %vm661
      %v663 = vsel %vm662, %v655, %v659
      %v664 = vand.u32 2147483647, %v654
      %vm665 = vcmp.eq.f32.partialorder %v664, 8.507059e+37
      %v666 = vand.u32 %v654, 2147483648
      %v667 = vor.u32 1.1754944e-38, %v666
      %v668 = vsel %vm665, %v667, %v663
      %v669 = vmul.f32 1.0, %v668
      %v670 = vtanh.pop %v616
      %v671 = vxor.u32 %v629, 2147483648
      %v672 = vmul.f32 %v671, 1.442695
      %v673 = vpow.pop %v672
      %v674 = vadd.f32 %v673, 1.0
      %v675 = vrcp.pop %v674
      %v676 = vmul.f32 %v674, %v675
      %v677 = vsub.f32 1.0, %v676
      %v678 = vmul.f32 %v675, %v677
      %v679 = vadd.f32 %v675, %v678
      %vm680 = vweird.f32 %v674
      %vm681 = vweird.f32 %v675
      %vm682 = vmor %vm680, %vm681
      %v683 = vsel %vm682, %v675, %v679
      %v684 = vand.u32 2147483647, %v674
      %vm685 = vcmp.eq.f32.partialorder %v684, 8.507059e+37
      %v686 = vand.u32 %v674, 2147483648
      %v687 = vor.u32 1.1754944e-38, %v686
      %v688 = vsel %vm685, %v687, %v683
      %v689 = vmul.f32 1.0, %v688
      %v690 = vmul.f32 %v669, %v375
      %v691 = vmul.f32 %v650, %v670
      %v692 = vadd.f32 %v690, %v691
      %v693 = vtanh.pop %v692
      %v694 = vmul.f32 %v689, %v693
      %v695 = vld [vmem:[%s341] sm:$0xf]
      %v696 = vld [vmem:[#allocation4] sm:$0x3]
      %v697 = vld [vmem:[#allocation5] sm:$0x3]
      %v698 = vpack.c.bf16 %v696, %v696
      %v699 = vld [vmem:[%s4] sm:$0xff]
      %v700 = vld [vmem:[%s4 + $0x8] sm:$0xff]
      %v701 = vld [vmem:[%s4 + $0x10] sm:$0xff]
      %v702 = vld [vmem:[%s4 + $0x18] sm:$0xff]
      %v703 = vld [vmem:[%s4 + $0x20] sm:$0xff]
      %v704 = vld [vmem:[%s4 + $0x28] sm:$0xff]
      %v705 = vld [vmem:[%s4 + $0x30] sm:$0xff]
      %v706 = vld [vmem:[%s4 + $0x38] sm:$0xff]
      %v707 = vld [vmem:[%s4 + $0x40] sm:$0xff]
      %v708 = vld [vmem:[%s4 + $0x48] sm:$0xff]
      %v709 = vld [vmem:[%s4 + $0x50] sm:$0xff]
      %v710 = vld [vmem:[%s4 + $0x58] sm:$0xff]
      %v711 = vld [vmem:[%s4 + $0x60] sm:$0xff]
      %v712 = vld [vmem:[%s4 + $0x68] sm:$0xff]
      %v713 = vld [vmem:[%s4 + $0x70] sm:$0xff]
      %v714 = vld [vmem:[%s4 + $0x78] sm:$0xff]
      %v715 = vld [vmem:[%s4 + $0x80] sm:$0xff]
      %v716 = vld [vmem:[%s4 + $0x88] sm:$0xff]
      %v717 = vld [vmem:[%s4 + $0x90] sm:$0xff]
      %v718 = vld [vmem:[%s4 + $0x98] sm:$0xff]
      %v719 = vld [vmem:[%s4 + $0xa0] sm:$0xff]
      %v720 = vld [vmem:[%s4 + $0xa8] sm:$0xff]
      %v721 = vld [vmem:[%s4 + $0xb0] sm:$0xff]
      %v722 = vld [vmem:[%s4 + $0xb8] sm:$0xff]
      %v723 = vld [vmem:[%s4 + $0xc0] sm:$0xff]
      %v724 = vld [vmem:[%s4 + $0xc8] sm:$0xff]
      %v725 = vld [vmem:[%s4 + $0xd0] sm:$0xff]
      %v726 = vld [vmem:[%s4 + $0xd8] sm:$0xff]
      %v727 = vld [vmem:[%s4 + $0xe0] sm:$0xff]
      %v728 = vld [vmem:[%s4 + $0xe8] sm:$0xff]
      %v729 = vld [vmem:[%s4 + $0xf0] sm:$0xff]
      %v730 = vld [vmem:[%s4 + $0xf8] sm:$0xff]
      %v731 = vunpack.c.l.bf16 %v695
      %v764 = vunpack.c.l.b16 %v699
      %v765 = vunpack.c.h.b16 %v699
      %v766 = vunpack.c.l.b16 %v700
      %v767 = vunpack.c.h.b16 %v700
      %v768 = vunpack.c.l.b16 %v701
      %v769 = vunpack.c.h.b16 %v701
      %v770 = vunpack.c.l.b16 %v702
      %v771 = vunpack.c.h.b16 %v702
      %v772 = vunpack.c.l.b16 %v703
      %v773 = vunpack.c.h.b16 %v703
      %v774 = vunpack.c.l.b16 %v704
      %v775 = vunpack.c.h.b16 %v704
      %v776 = vunpack.c.l.b16 %v705
      %v777 = vunpack.c.h.b16 %v705
      %v778 = vunpack.c.l.b16 %v706
      %v779 = vunpack.c.h.b16 %v706
      %v780 = vunpack.c.l.b16 %v707
      %v781 = vunpack.c.h.b16 %v707
      %v782 = vunpack.c.l.b16 %v708
      %v783 = vunpack.c.h.b16 %v708
      %v784 = vunpack.c.l.b16 %v709
      %v785 = vunpack.c.h.b16 %v709
      %v786 = vunpack.c.l.b16 %v710
      %v787 = vunpack.c.h.b16 %v710
      %v788 = vunpack.c.l.b16 %v711
      %v789 = vunpack.c.h.b16 %v711
      %v790 = vunpack.c.l.b16 %v712
      %v791 = vunpack.c.h.b16 %v712
      %v792 = vunpack.c.l.b16 %v713
      %v793 = vunpack.c.h.b16 %v713
      %v794 = vunpack.c.l.b16 %v714
      %v795 = vunpack.c.h.b16 %v714
      %v796 = vunpack.c.l.b16 %v715
      %v797 = vunpack.c.h.b16 %v715
      %v798 = vunpack.c.l.b16 %v716
      %v799 = vunpack.c.h.b16 %v716
      %v800 = vunpack.c.l.b16 %v717
      %v801 = vunpack.c.h.b16 %v717
      %v802 = vunpack.c.l.b16 %v718
      %v803 = vunpack.c.h.b16 %v718
      %v804 = vunpack.c.l.b16 %v719
      %v805 = vunpack.c.h.b16 %v719
      %v806 = vunpack.c.l.b16 %v720
      %v807 = vunpack.c.h.b16 %v720
      %v808 = vunpack.c.l.b16 %v721
      %v809 = vunpack.c.h.b16 %v721
      %v810 = vunpack.c.l.b16 %v722
      %v811 = vunpack.c.h.b16 %v722
      %v812 = vunpack.c.l.b16 %v723
      %v813 = vunpack.c.h.b16 %v723
      %v814 = vunpack.c.l.b16 %v724
      %v815 = vunpack.c.h.b16 %v724
      %v816 = vunpack.c.l.b16 %v725
      %v817 = vunpack.c.h.b16 %v725
      %v818 = vunpack.c.l.b16 %v726
      %v819 = vunpack.c.h.b16 %v726
      %v820 = vunpack.c.l.b16 %v727
      %v821 = vunpack.c.h.b16 %v727
      %v822 = vunpack.c.l.b16 %v728
      %v823 = vunpack.c.h.b16 %v728
      %v824 = vunpack.c.l.b16 %v729
      %v825 = vunpack.c.h.b16 %v729
      %v826 = vunpack.c.l.b16 %v730
      %v827 = vunpack.c.h.b16 %v730
      %v828 = vpack.c.b16 %v768, %v764
      %v829 = vpack.c.b16 %v769, %v765
      %v830 = vpack.c.b16 %v770, %v766
      %v831 = vpack.c.b16 %v771, %v767
      %v832 = vpack.c.b16 %v776, %v772
      %v833 = vpack.c.b16 %v777, %v773
      %v834 = vpack.c.b16 %v778, %v774
      %v835 = vpack.c.b16 %v779, %v775
      %v836 = vpack.c.b16 %v784, %v780
      %v837 = vpack.c.b16 %v785, %v781
      %v838 = vpack.c.b16 %v786, %v782
      %v839 = vpack.c.b16 %v787, %v783
      %v840 = vpack.c.b16 %v792, %v788
      %v841 = vpack.c.b16 %v793, %v789
      %v842 = vpack.c.b16 %v794, %v790
      %v843 = vpack.c.b16 %v795, %v791
      %v844 = vpack.c.b16 %v800, %v796
      %v845 = vpack.c.b16 %v801, %v797
      %v846 = vpack.c.b16 %v802, %v798
      %v847 = vpack.c.b16 %v803, %v799
      %v848 = vpack.c.b16 %v808, %v804
      %v849 = vpack.c.b16 %v809, %v805
      %v850 = vpack.c.b16 %v810, %v806
      %v851 = vpack.c.b16 %v811, %v807
      %v852 = vpack.c.b16 %v816, %v812
      %v853 = vpack.c.b16 %v817, %v813
      %v854 = vpack.c.b16 %v818, %v814
      %v855 = vpack.c.b16 %v819, %v815
      %v856 = vpack.c.b16 %v824, %v820
      %v857 = vpack.c.b16 %v825, %v821
      %v858 = vpack.c.b16 %v826, %v822
      %v859 = vpack.c.b16 %v827, %v823
      %893 = vst [vmem:[#allocation1] ss:$4 sm:$0xff] %v731
      %v894 = vld.sshfl [vmem:[#allocation1] sm:$0xff pattern:$0x73625140]
      %v895 = vld.sshfl [vmem:[#allocation1 + $0x8] sm:$0xff pattern:$0x73625140]
      %v896 = vld.sshfl [vmem:[#allocation1 + $0x10] sm:$0xff pattern:$0x73625140]
      %v897 = vld.sshfl [vmem:[#allocation1 + $0x18] sm:$0xff pattern:$0x73625140]
      %902 = vmatpush.bf16.msra.mxu0 %v856
      %903 = vmatpush.bf16.msra.mxu0 %v852
      %904 = vmatpush.bf16.msra.mxu0 %v848
      %905 = vmatpush.bf16.msra.mxu0 %v844
      %906 = vmatpush.bf16.msra.mxu0 %v840
      %907 = vmatpush.bf16.msra.mxu0 %v836
      %908 = vmatpush.bf16.msra.mxu0 %v832
      %909 = vmatpush.bf16.msra.mxu0 %v828
      %910 = vmatmul.bf16.gmra.mxu0 %v698
      %v911 = vpop.f32.mrf.mxu0
      %v912 = vadd.f32 %v894, %v911
      %v913 = vpop.f32.mrf.mxu0
      %914 = vdwg.mxu0
      %915 = vmatpush.bf16.msra.mxu0 %v857
      %916 = vmatpush.bf16.msra.mxu0 %v853
      %917 = vmatpush.bf16.msra.mxu0 %v849
      %918 = vmatpush.bf16.msra.mxu0 %v845
      %919 = vmatpush.bf16.msra.mxu0 %v841
      %920 = vmatpush.bf16.msra.mxu0 %v837
      %921 = vmatpush.bf16.msra.mxu0 %v833
      %922 = vmatpush.bf16.msra.mxu0 %v829
      %923 = vmatmul.bf16.gmra.mxu0 %v698
      %v924 = vpop.f32.mrf.mxu0
      %v925 = vadd.f32 %v895, %v924
      %v926 = vpop.f32.mrf.mxu0
      %927 = vdwg.mxu0
      %928 = vmatpush.bf16.msra.mxu0 %v858
      %929 = vmatpush.bf16.msra.mxu0 %v854
      %930 = vmatpush.bf16.msra.mxu0 %v850
      %931 = vmatpush.bf16.msra.mxu0 %v846
      %932 = vmatpush.bf16.msra.mxu0 %v842
      %933 = vmatpush.bf16.msra.mxu0 %v838
      %934 = vmatpush.bf16.msra.mxu0 %v834
      %935 = vmatpush.bf16.msra.mxu0 %v830
      %936 = vmatmul.bf16.gmra.mxu0 %v698
      %v937 = vpop.f32.mrf.mxu0
      %v938 = vadd.f32 %v896, %v937
      %v939 = vpop.f32.mrf.mxu0
      %940 = vdwg.mxu0
      %941 = vmatpush.bf16.msra.mxu0 %v859
      %942 = vmatpush.bf16.msra.mxu0 %v855
      %943 = vmatpush.bf16.msra.mxu0 %v851
      %944 = vmatpush.bf16.msra.mxu0 %v847
      %945 = vmatpush.bf16.msra.mxu0 %v843
      %946 = vmatpush.bf16.msra.mxu0 %v839
      %947 = vmatpush.bf16.msra.mxu0 %v835
      %948 = vmatpush.bf16.msra.mxu0 %v831
      %949 = vmatmul.bf16.gmra.mxu0 %v698
      %v950 = vpop.f32.mrf.mxu0
      %v951 = vadd.f32 %v897, %v950
      %v952 = vpop.f32.mrf.mxu0
      %953 = vdwg.mxu0
      %v954 = vxor.u32 %v912, 2147483648
      %v955 = vmul.f32 %v954, 1.442695
      %v956 = vpow.pop %v955
      %v957 = vadd.f32 %v956, 1.0
      %v958 = vrcp.pop %v957
      %v959 = vmul.f32 %v957, %v958
      %v960 = vsub.f32 1.0, %v959
      %v961 = vmul.f32 %v958, %v960
      %v962 = vadd.f32 %v958, %v961
      %vm963 = vweird.f32 %v957
      %vm964 = vweird.f32 %v958
      %vm965 = vmor %vm963, %vm964
      %v966 = vsel %vm965, %v958, %v962
      %v967 = vand.u32 2147483647, %v957
      %vm968 = vcmp.eq.f32.partialorder %v967, 8.507059e+37
      %v969 = vand.u32 %v957, 2147483648
      %v970 = vor.u32 1.1754944e-38, %v969
      %v971 = vsel %vm968, %v970, %v966
      %v972 = vmul.f32 1.0, %v971
      %v973 = vxor.u32 %v925, 2147483648
      %v974 = vmul.f32 %v973, 1.442695
      %v975 = vpow.pop %v974
      %v976 = vadd.f32 %v975, 1.0
      %v977 = vrcp.pop %v976
      %v978 = vmul.f32 %v976, %v977
      %v979 = vsub.f32 1.0, %v978
      %v980 = vmul.f32 %v977, %v979
      %v981 = vadd.f32 %v977, %v980
      %vm982 = vweird.f32 %v976
      %vm983 = vweird.f32 %v977
      %vm984 = vmor %vm982, %vm983
      %v985 = vsel %vm984, %v977, %v981
      %v986 = vand.u32 2147483647, %v976
      %vm987 = vcmp.eq.f32.partialorder %v986, 8.507059e+37
      %v988 = vand.u32 %v976, 2147483648
      %v989 = vor.u32 1.1754944e-38, %v988
      %v990 = vsel %vm987, %v989, %v985
      %v991 = vmul.f32 1.0, %v990
      %v992 = vtanh.pop %v938
      %v993 = vxor.u32 %v951, 2147483648
      %v994 = vmul.f32 %v993, 1.442695
      %v995 = vpow.pop %v994
      %v996 = vadd.f32 %v995, 1.0
      %v997 = vrcp.pop %v996
      %v998 = vmul.f32 %v996, %v997
      %v999 = vsub.f32 1.0, %v998
      %v1000 = vmul.f32 %v997, %v999
      %v1001 = vadd.f32 %v997, %v1000
      %vm1002 = vweird.f32 %v996
      %vm1003 = vweird.f32 %v997
      %vm1004 = vmor %vm1002, %vm1003
      %v1005 = vsel %vm1004, %v997, %v1001
      %v1006 = vand.u32 2147483647, %v996
      %vm1007 = vcmp.eq.f32.partialorder %v1006, 8.507059e+37
      %v1008 = vand.u32 %v996, 2147483648
      %v1009 = vor.u32 1.1754944e-38, %v1008
      %v1010 = vsel %vm1007, %v1009, %v1005
      %v1011 = vmul.f32 1.0, %v1010
      %v1012 = vmul.f32 %v991, %v697
      %v1013 = vmul.f32 %v972, %v992
      %v1014 = vadd.f32 %v1012, %v1013
      %v1015 = vtanh.pop %v1014
      %v1016 = vmul.f32 %v1011, %v1015
      %v1017 = vstv %s23
      %vm1018 = vcmp.lt.s32.totalorder %v1017, %v371
      %v1019 = vstv %s372
      %vm1020 = vcmp.lt.s32.totalorder %v1019, %v371
      %v1021 = vsel %vm1018, 1, 0
      %1022 = vset.pattern.permute.xlu0 0
      %1023 = vperm.xlu0 %1022, %v1021
      %v1024 = vpop.permute.xlu0 %1023
      %vm1025 = vcmp.eq.s32.totalorder %v1024, 1
      %v1026 = vsel %vm1025, %v694, 0.0
      %1027 = vst [vmem:[%s353] sm:$0x3] %v1026
      %v1028 = vsel %vm1020, 1, 0
      %1029 = vset.pattern.permute.xlu0 0
      %1030 = vperm.xlu0 %1029, %v1028
      %v1031 = vpop.permute.xlu0 %1030
      %vm1032 = vcmp.eq.s32.totalorder %v1031, 1
      %v1033 = vsel %vm1032, %v1016, 0.0
      %1034 = vst [vmem:[%s361] sm:$0x3] %v1033
      %v1035 = vld [vmem:[#allocation2] sm:$0x3]
      %v1036 = vsel %vm1025, %v694, %v1035
      %1037 = vst [vmem:[#allocation2] sm:$0x3] %v1036
      %v1038 = vld [vmem:[#allocation3] sm:$0x3]
      %v1039 = vsel %vm1025, %v692, %v1038
      %1040 = vst [vmem:[#allocation3] sm:$0x3] %v1039
      %v1041 = vld [vmem:[#allocation4] sm:$0x3]
      %v1042 = vsel %vm1032, %v1016, %v1041
      %1043 = vst [vmem:[#allocation4] sm:$0x3] %v1042
      %v1044 = vld [vmem:[#allocation5] sm:$0x3]
      %v1045 = vsel %vm1032, %v1014, %v1044
      %1046 = vst [vmem:[#allocation5] sm:$0x3] %v1045
      %p1047 = scmp.lt.s32.totalorder %s23, 7
      %s1048 = scalar_select %p1047, %s23, 7
      %p1049 = scmp.lt.s32.totalorder %s22, 0
      %s1050 = scalar_select %p1049, %s22, 0
      %s1051 = sadd.s32 %s1050, %s1048
      %s1052 = smul.addr %s1051, 2
      %s1053 = scalar_lea.vmem %s5, %s1052
      %s1054 = ssub.s32 7, %s23
      %p1055 = scmp.lt.s32.totalorder %s1054, 7
      %s1056 = scalar_select %p1055, %s1054, 7
      %p1057 = scmp.lt.s32.totalorder %s22, 0
      %s1058 = scalar_select %p1057, %s22, 0
      %s1059 = sadd.s32 %s1058, %s1056
      %s1060 = smul.addr %s1059, 2
      %s1061 = scalar_lea.vmem %s6, %s1060
      // Predicated region
      $region45: #{bilstm.3} parent=39 // pred_check
        %p1062 = pneg %p176
      $region46: #{bilstm.3} parent=39 // pred_check_branch
        %1064 = sbr.rel (%p1062) target = $region48
      $region47: #{bilstm.3} parent=39 // pred_region
        _
      $region48: #{bilstm.3} parent=39 // pred_fallthru
        _
      // Predicated region
      $region49: #{bilstm.3} parent=39 // pred_check
        %p1065 = pneg %p206
      $region50: #{bilstm.3} parent=39 // pred_check_branch
        %1067 = sbr.rel (%p1065) target = $region52
      $region51: #{bilstm.3} parent=39 // pred_region
        %s1068 = ssub.s32 7, %s23
      $region52: #{bilstm.3} parent=39 // pred_fallthru
        _
    $region40: #{bilstm.3} parent=5 // pred_fallthru
      _
    %p1069 = scmp.le.s32.totalorder 2, %s13
    // Predicated region
    $region53: #{bilstm.3} parent=5 // pred_check
      %p1070 = pneg %p1069
    $region54: #{bilstm.3} parent=5 // pred_check_branch
      %1072 = sbr.rel (%p1070) target = $region56
    $region55: #{bilstm.3} parent=5 // pred_region
      %s1073 = ssub.s32 %s13, 2
      // Predicated region
      $region57: #{bilstm.3} parent=55 // pred_check
        %p1074 = pneg %p182
      $region58: #{bilstm.3} parent=55 // pred_check_branch
        %1076 = sbr.rel (%p1074) target = $region60
      $region59: #{bilstm.3} parent=55 // pred_region
        %p1077 = scmp.lt.s32.totalorder %s25, 7
        %s1078 = scalar_select %p1077, %s25, 7
        %p1079 = scmp.lt.s32.totalorder %s24, 0
        %s1080 = scalar_select %p1079, %s24, 0
        %s1081 = sadd.s32 %s1080, %s1078
        %s1082 = smul.addr %s1081, 2
        %s1083 = scalar_lea.vmem %s5, %s1082
      $region60: #{bilstm.3} parent=55 // pred_fallthru
        _
      // Predicated region
      $region61: #{bilstm.3} parent=55 // pred_check
        %p1084 = pneg %p212
      $region62: #{bilstm.3} parent=55 // pred_check_branch
        %1086 = sbr.rel (%p1084) target = $region64
      $region63: #{bilstm.3} parent=55 // pred_region
        %s1087 = ssub.s32 7, %s25
        %p1088 = scmp.lt.s32.totalorder %s1087, 7
        %s1089 = scalar_select %p1088, %s1087, 7
        %p1090 = scmp.lt.s32.totalorder %s24, 0
        %s1091 = scalar_select %p1090, %s24, 0
        %s1092 = sadd.s32 %s1091, %s1089
        %s1093 = smul.addr %s1092, 2
        %s1094 = scalar_lea.vmem %s6, %s1093
      $region64: #{bilstm.3} parent=55 // pred_fallthru
        _
    $region56: #{bilstm.3} parent=5 // pred_fallthru
      _
  $region6: #{bilstm.3} parent=0 // loop_footer
    %s17 = sadd.s32 1, %s13
  $region7: #{bilstm.3} parent=0 // loop_footer_branch
    %12 = sbr.rel target = $region3
  $region8: #{bilstm.3} parent=0 // loop_exit
    _

</llo_original>
